<compile_context>
chip_gen: v6e
topology: v6e:2x2x1
jax: 0.10.0
libtpu: 0.0.40
codegen_flags: <defaults>
</compile_context>

<pallas_src>
import functools
import math

import jax
import jax.numpy as jnp
from jax import lax
from jax.experimental import pallas as pl
from jax.experimental.pallas import tpu as pltpu

_CONV_PAD = 8   # sublane-aligned causal-conv history rows (>= d_conv - 1)
_LANE = 128


def _round_up(x, m):
    return (x + m - 1) // m * m


# ----------------------------- in-kernel helpers -----------------------------

def _silu(x):
    return x * (1.0 / (1.0 + jnp.exp(-x)))


def _softplus(x):
    return jnp.where(x > 20.0, x, jnp.log1p(jnp.exp(jnp.minimum(x, 20.0))))


def _layernorm(x, w, b, eps):
    x = x.astype(jnp.float32)
    mu = jnp.mean(x, axis=-1, keepdims=True)
    xc = x - mu
    var = jnp.mean(xc * xc, axis=-1, keepdims=True)
    return xc * lax.rsqrt(var + eps) * w[None, :] + b[None, :]


# ------------------------------- layer kernel --------------------------------

def mamba_block_kernel(hidden_ref, resid_ref,
                       norm_w_ref, norm_b_ref, in_proj_wT_ref,
                       conv_wT_ref, conv_b_ref, x_proj_wT_ref,
                       dt_proj_wT_ref, dt_proj_b_ref,
                       A_logT_ref, D_ref, out_proj_wT_ref,
                       normf_w_ref, normf_b_ref,
                       hidden_out_ref, resid_out_ref,
                       state_ref, conv_tail_ref, conv_pad_ref,
                       delta_ref, g_ref, bc_ref, y_ref,
                       *, d_inner, d_state, dt_pad, d_conv, eps,
                       fuse_final_norm, unroll):
    c = pl.program_id(1)                              # sequence-chunk index
    h = hidden_ref[0].astype(jnp.float32)             # (Lc, D)
    r = resid_ref[0].astype(jnp.float32)              # (Lc, D)
    Lc = h.shape[0]

    # residual add (layer 0 receives zeros -> residual = hidden_states)
    res = h + r
    if not fuse_final_norm:
        resid_out_ref[0] = res.astype(resid_out_ref.dtype)

    # pre-norm LayerNorm + fused in_proj (x and z halves in one MXU push)
    x_bf = _layernorm(res, norm_w_ref[0], norm_b_ref[0], eps).astype(jnp.bfloat16)
    xz = jnp.dot(x_bf, in_proj_wT_ref[...], preferred_element_type=jnp.float32)
    xpart = xz[:, :d_inner]                           # (Lc, d_inner) conv input
    z = xz[:, d_inner:]                               # (Lc, d_inner) gate input

    # reset carried state at the first chunk of every sequence
    @pl.when(c == 0)
    def _():
        conv_tail_ref[...] = jnp.zeros_like(conv_tail_ref)
        state_ref[...] = jnp.zeros_like(state_ref)

    # ---- causal depthwise conv1d; tail carried across sequence chunks ----
    conv_pad_ref[0:_CONV_PAD, :] = conv_tail_ref[...]
    conv_pad_ref[_CONV_PAD:_CONV_PAD + Lc, :] = xpart
    # last _CONV_PAD rows of (tail ++ xpart) become the next chunk's tail
    conv_tail_ref[...] = conv_pad_ref[Lc:Lc + _CONV_PAD, :]

    u = jnp.broadcast_to(conv_b_ref[0][None, :], (Lc, d_inner))
    for k in range(d_conv):                           # tiny static unroll
        start = _CONV_PAD - (d_conv - 1 - k)
        u = u + conv_wT_ref[k][None, :] * conv_pad_ref[start:start + Lc, :]
    u = _silu(u)                                      # (Lc, d_inner) scan input

    # ---- fused, lane-aligned x_proj: [ dt (padded to 128) | B | C ] ----
    dbc = jnp.dot(u.astype(jnp.bfloat16), x_proj_wT_ref[...],
                  preferred_element_type=jnp.float32)
    delta = jnp.dot(dbc[:, :dt_pad].astype(jnp.bfloat16), dt_proj_wT_ref[...],
                    preferred_element_type=jnp.float32)
    delta = _softplus(delta + dt_proj_b_ref[0][None, :])       # (Lc, d_inner)

    A_T = -jnp.exp(A_logT_ref[...])                   # (d_state, d_inner)

    delta_ref[...] = delta
    g_ref[...] = delta * u
    bc_ref[...] = dbc[:, dt_pad:dt_pad + 2 * d_state]           # (Lc, 2*d_state)

    # ---- selective scan: one pass over time with a carried (d_state, d_inner)
    #      state; per 8 steps: aligned block loads, one small transpose, one
    #      aligned (8, d_inner) store of y rows built in registers. ----
    U = unroll

    def scan_blk(i, state):
        t0 = pl.multiple_of(i * U, U)
        d_blk = delta_ref[pl.ds(t0, U), :]            # (U, d_inner)
        g_blk = g_ref[pl.ds(t0, U), :]                # (U, d_inner)
        bcT = bc_ref[pl.ds(t0, U), :].T               # (2*d_state, U)
        rows = []
        for j in range(U):                            # static micro-unroll
            dA = jnp.exp(d_blk[j:j + 1, :] * A_T)                 # (S, d_inner)
            state = dA * state + g_blk[j:j + 1, :] * bcT[0:d_state, j:j + 1]
            rows.append(jnp.sum(bcT[d_state:, j:j + 1] * state,
                                axis=0, keepdims=True))           # (1, d_inner)
        y_ref[pl.ds(t0, U), :] = jnp.concatenate(rows, axis=0)
        return state

    state_fin = lax.fori_loop(0, Lc // U, scan_blk, state_ref[...])
    state_ref[...] = state_fin                        # carry to the next chunk

    # skip connection, SiLU(z) gate, out_proj
    y = y_ref[...] + u * D_ref[0][None, :]
    y = y * _silu(z)
    out = jnp.dot(y.astype(jnp.bfloat16), out_proj_wT_ref[...],
                  preferred_element_type=jnp.float32)             # (Lc, D)

    if fuse_final_norm:
        # fused final: residual = mixer_out + residual; out = LayerNorm_f(residual)
        final_res = out + res
        resid_out_ref[0] = final_res.astype(resid_out_ref.dtype)
        hidden_out_ref[0] = _layernorm(final_res, normf_w_ref[0], normf_b_ref[0],
                                       eps).astype(hidden_out_ref.dtype)
    else:
        hidden_out_ref[0] = out.astype(hidden_out_ref.dtype)


def lm_head_kernel(h_ref, wT_ref, o_ref):
    o_ref[...] = jnp.dot(h_ref[...], wT_ref[...],
                         preferred_element_type=jnp.float32).astype(o_ref.dtype)


# --------------------------------- wrappers ----------------------------------

def _vmem_limit_bytes():
    try:
        kind = jax.devices()[0].device_kind.lower()
    except Exception:
        kind = ""
    if "v7" in kind:
        return 56 * 1024 * 1024      # 64 MiB physical: leave compiler headroom
    if any(v in kind for v in ("v4", "v5", "v6")):
        return 100 * 1024 * 1024     # 128 MiB physical: use most of it
    return 56 * 1024 * 1024


def _pick_chunk(L, pref=256):
    """Largest divisor of L that is <= pref, preferring multiples of 8."""
    if L <= pref:
        return L
    best = None
    for t in range(pref, 7, -1):
        if L % t == 0:
            if t % 8 == 0:
                return t
            best = best or t
    return best or L


def _pick_tile(n, pref, align=128):
    if n <= pref:
        return n
    best = None
    for t in range(pref, 0, -1):
        if n % t == 0:
            if t % align == 0:
                return t
            best = best or t
    return best or n


def _const_spec(p):
    nd = p.ndim
    return pl.BlockSpec(p.shape, lambda b, c, _n=nd: (0,) * _n)


def mixer_layer(hidden, residual, params, normf_w, normf_b, *,
                d_inner, d_state, dt_pad, d_conv, eps,
                fuse_final_norm=False, chunk=None):
    B, L, D = hidden.shape
    Lc = _pick_chunk(L) if chunk is None else chunk
    assert L % Lc == 0
    NC = L // Lc
    unroll = 8 if Lc % 8 == 0 else (4 if Lc % 4 == 0 else 1)

    kernel = functools.partial(
        mamba_block_kernel, d_inner=d_inner, d_state=d_state, dt_pad=dt_pad,
        d_conv=d_conv, eps=eps, fuse_final_norm=fuse_final_norm, unroll=unroll)

    spec_bld = pl.BlockSpec((1, Lc, D), lambda b, c: (b, c, 0))
    all_params = list(params) + [normf_w, normf_b]
    in_specs = [spec_bld, spec_bld] + [_const_spec(p) for p in all_params]

    # advisory cost estimate: helps XLA schedule surrounding ops
    xcols = dt_pad + 2 * d_state
    mm_flops = 2 * Lc * (D * 2 * d_inner + d_inner * xcols
                         + dt_pad * d_inner + d_inner * D)
    scan_flops = 8 * Lc * d_state * d_inner
    trans = Lc * d_inner * (d_state + 4)
    wbytes = sum(int(p.size) * p.dtype.itemsize for p in all_params)
    cost = pl.CostEstimate(
        flops=int((mm_flops + scan_flops) * B * NC),
        transcendentals=int(trans * B * NC),
        bytes_accessed=int((4 * Lc * D * 4 + wbytes) * B * NC))

    return pl.pallas_call(
        kernel,
        grid=(B, NC),
        in_specs=in_specs,
        out_specs=(spec_bld, spec_bld),
        out_shape=(jax.ShapeDtypeStruct((B, L, D), hidden.dtype),
                   jax.ShapeDtypeStruct((B, L, D), hidden.dtype)),
        scratch_shapes=[
            pltpu.VMEM((d_state, d_inner), jnp.float32),         # carried SSM state
            pltpu.VMEM((_CONV_PAD, d_inner), jnp.float32),       # carried conv tail
            pltpu.VMEM((_CONV_PAD + Lc, d_inner), jnp.float32),  # padded conv input
            pltpu.VMEM((Lc, d_inner), jnp.float32),              # delta
            pltpu.VMEM((Lc, d_inner), jnp.float32),              # delta * u
            pltpu.VMEM((Lc, 2 * d_state), jnp.float32),          # B | C
            pltpu.VMEM((Lc, d_inner), jnp.float32),              # y accumulator
        ],
        compiler_params=pltpu.CompilerParams(
            dimension_semantics=("parallel", "arbitrary"),
            vmem_limit_bytes=_vmem_limit_bytes()),
        cost_estimate=cost,
    )(hidden, residual, *all_params)


def lm_head(hidden, emb_table):
    # tie_embeddings=True: lm_head.weight = embedding.weight
    B, L, D = hidden.shape
    V = emb_table.shape[0]
    M = B * L
    h2 = hidden.reshape(M, D).astype(jnp.bfloat16)   # halve input DMA traffic
    wT = jnp.asarray(emb_table.T, jnp.bfloat16)      # (D, V) bf16 MXU operand
    tm = _pick_tile(M, 256)
    tv = _pick_tile(V, 2048)
    cost = pl.CostEstimate(flops=int(2 * M * D * V), transcendentals=0,
                           bytes_accessed=int(M * D * 2 + D * V * 2 + M * V * 4))
    logits = pl.pallas_call(
        lm_head_kernel,
        grid=(M // tm, V // tv),
        in_specs=[pl.BlockSpec((tm, D), lambda i, j: (i, 0)),
                  pl.BlockSpec((D, tv), lambda i, j: (0, j))],
        out_specs=pl.BlockSpec((tm, tv), lambda i, j: (i, j)),
        out_shape=jax.ShapeDtypeStruct((M, V), jnp.float32),
        compiler_params=pltpu.CompilerParams(
            dimension_semantics=("parallel", "parallel"),
            vmem_limit_bytes=_vmem_limit_bytes()),
        cost_estimate=cost,
    )(h2, wT)
    return logits.reshape(B, L, V)


# ------------------------------- param builder --------------------------------

def init_layer_params(key, d_model, d_inner, d_state, dt_rank, dt_pad, d_conv,
                      n_layer):
    ks = jax.random.split(key, 7)
    u = lambda k, shape, s: jax.random.uniform(k, shape, jnp.float32, -s, s)
    bf = jnp.bfloat16

    norm_w = jnp.ones((1, d_model), jnp.float32)
    norm_b = jnp.zeros((1, d_model), jnp.float32)
    in_proj_w = u(ks[0], (2 * d_inner, d_model), 1.0 / math.sqrt(d_model))
    conv_w = u(ks[1], (d_inner, d_conv), 1.0 / math.sqrt(d_conv))
    conv_b = u(ks[2], (1, d_inner), 1.0 / math.sqrt(d_conv))
    x_proj_w = u(ks[3], (dt_rank + 2 * d_state, d_inner), 1.0 / math.sqrt(d_inner))
    dt_proj_w = u(ks[4], (d_inner, dt_rank), dt_rank ** -0.5)
    # Mamba-style dt bias init (inverse softplus of dt in [1e-3, 0.1])
    dt = jnp.exp(jax.random.uniform(ks[5], (d_inner,), jnp.float32)
                 * (math.log(0.1) - math.log(1e-3)) + math.log(1e-3))
    dt = jnp.clip(dt, 1e-4, None)
    dt_proj_b = (dt + jnp.log(-jnp.expm1(-dt))).reshape(1, d_inner)
    A_log = jnp.log(jnp.broadcast_to(
        jnp.arange(1, d_state + 1, dtype=jnp.float32), (d_inner, d_state)))
    D_param = jnp.ones((1, d_inner), jnp.float32)
    # rescale_prenorm_residual: out_proj.weight /= sqrt(n_layer)
    out_proj_w = u(ks[6], (d_model, d_inner),
                   1.0 / math.sqrt(d_inner)) / math.sqrt(n_layer)

    # x_proj^T with the dt segment zero-padded to dt_pad columns so the B|C
    # segment starts on a 128-lane boundary; dt_proj^T rows padded to match.
    x_proj_wT = jnp.zeros((d_inner, dt_pad + 2 * d_state), jnp.float32)
    x_proj_wT = x_proj_wT.at[:, :dt_rank].set(x_proj_w[:dt_rank].T)
    x_proj_wT = x_proj_wT.at[:, dt_pad:].set(x_proj_w[dt_rank:].T)
    dt_proj_wT = jnp.zeros((dt_pad, d_inner), jnp.float32)
    dt_proj_wT = dt_proj_wT.at[:dt_rank, :].set(dt_proj_w.T)

    return (
        norm_w, norm_b,
        jnp.asarray(in_proj_w.T, bf),      # (D, 2*d_inner) bf16  fused x|z
        jnp.asarray(conv_w.T),             # (d_conv, d_inner) f32
        conv_b,                            # (1, d_inner) f32
        jnp.asarray(x_proj_wT, bf),        # (d_inner, dt_pad + 2*d_state) bf16
        jnp.asarray(dt_proj_wT, bf),       # (dt_pad, d_inner) bf16
        dt_proj_b,                         # (1, d_inner) f32
        jnp.asarray(A_log.T),              # (d_state, d_inner) f32
        D_param,                           # (1, d_inner) f32
        jnp.asarray(out_proj_w.T, bf),     # (d_inner, D) bf16
    )


# ----------------------------------- main -------------------------------------

if __name__ == "__main__":
    # small MambaLMHeadModel config
    B, L = 2, 8
    d_model = 32
    n_layer = 2
    vocab_size = 64
    d_state, d_conv, expand = 16, 4, 2
    d_inner = expand * d_model
    dt_rank = math.ceil(d_model / 16)
    dt_pad = _round_up(dt_rank, _LANE)
    eps = 1e-5

    root = jax.random.PRNGKey(0)
    k_emb, k_ids, k_layers = jax.random.split(root, 3)

    # nn.Embedding init: normal(std=0.02) per _init_weights
    emb_table = 0.02 * jax.random.normal(k_emb, (vocab_size, d_model), jnp.float32)
    input_ids = jax.random.randint(k_ids, (B, L), 0, vocab_size)

    layer_keys = jax.random.split(k_layers, n_layer)
    layer_params = [
        init_layer_params(layer_keys[i], d_model, d_inner, d_state, dt_rank,
                          dt_pad, d_conv, n_layer)
        for i in range(n_layer)
    ]
    norm_f_w = jnp.ones((1, d_model), jnp.float32)
    norm_f_b = jnp.zeros((1, d_model), jnp.float32)

    # embedding lookup (glue; token gather stays outside the kernel)
    hidden = emb_table[input_ids]                 # (B, L, d_model)
    residual = jnp.zeros_like(hidden)             # "residual = None" -> add 0

    for i in range(n_layer):
        is_last = (i == n_layer - 1)
        hidden, residual = mixer_layer(
            hidden, residual, layer_params[i], norm_f_w, norm_f_b,
            d_inner=d_inner, d_state=d_state, dt_pad=dt_pad, d_conv=d_conv,
            eps=eps, fuse_final_norm=is_last)

    logits = lm_head(hidden, emb_table)           # (B, L, vocab_size)

    # TODO(synk): the reference forward also runs debug print()s, a secure-protocol
    # branch and an infinite `while True: pass`; these have no kernel equivalent.
    jax.block_until_ready(logits)
    assert hidden.shape == (B, L, d_model)
    assert logits.shape == (B, L, vocab_size) and bool(jnp.all(jnp.isfinite(logits)))
    print("KERNEL_OK")
</pallas_src>

<mosaic_0001>
module attributes {stable_mosaic.version = 11 : i64} {
  func.func @mamba_block_kernel(%arg0: i32, %arg1: i32, %arg2: memref<1x8x32xf32, #tpu.memory_space<vmem>>, %arg3: memref<1x8x32xf32, #tpu.memory_space<vmem>>, %arg4: memref<1x32xf32, #tpu.memory_space<vmem>>, %arg5: memref<1x32xf32, #tpu.memory_space<vmem>>, %arg6: memref<32x128xbf16, #tpu.memory_space<vmem>>, %arg7: memref<4x64xf32, #tpu.memory_space<vmem>>, %arg8: memref<1x64xf32, #tpu.memory_space<vmem>>, %arg9: memref<64x160xbf16, #tpu.memory_space<vmem>>, %arg10: memref<128x64xbf16, #tpu.memory_space<vmem>>, %arg11: memref<1x64xf32, #tpu.memory_space<vmem>>, %arg12: memref<16x64xf32, #tpu.memory_space<vmem>>, %arg13: memref<1x64xf32, #tpu.memory_space<vmem>>, %arg14: memref<64x32xbf16, #tpu.memory_space<vmem>>, %arg15: memref<1x32xf32, #tpu.memory_space<vmem>>, %arg16: memref<1x32xf32, #tpu.memory_space<vmem>>, %arg17: memref<1x8x32xf32, #tpu.memory_space<vmem>>, %arg18: memref<1x8x32xf32, #tpu.memory_space<vmem>>, %arg19: memref<16x64xf32, #tpu.memory_space<vmem>>, %arg20: memref<8x64xf32, #tpu.memory_space<vmem>>, %arg21: memref<16x64xf32, #tpu.memory_space<vmem>>, %arg22: memref<8x64xf32, #tpu.memory_space<vmem>>, %arg23: memref<8x64xf32, #tpu.memory_space<vmem>>, %arg24: memref<8x32xf32, #tpu.memory_space<vmem>>, %arg25: memref<8x64xf32, #tpu.memory_space<vmem>>) attributes {dimension_semantics = [#tpu.dimension_semantics<parallel>, #tpu.dimension_semantics<arbitrary>], iteration_bounds = array<i64: 2, 1>, scalar_prefetch = 0 : i64, scratch_operands = 7 : i64, tpu.core_type = #tpu.core_type<tc>, window_params = [{transform_indices = @transform_0, window_bounds = array<i64: 1, 8, 32>}, {transform_indices = @transform_1, window_bounds = array<i64: 1, 8, 32>}, {pipeline_mode = #tpu.pipeline_mode<synchronous>, transform_indices = @transform_2, window_bounds = array<i64: 1, 32>}, {pipeline_mode = #tpu.pipeline_mode<synchronous>, transform_indices = @transform_3, window_bounds = array<i64: 1, 32>}, {pipeline_mode = #tpu.pipeline_mode<synchronous>, transform_indices = @transform_4, window_bounds = array<i64: 32, 128>}, {pipeline_mode = #tpu.pipeline_mode<synchronous>, transform_indices = @transform_5, window_bounds = array<i64: 4, 64>}, {pipeline_mode = #tpu.pipeline_mode<synchronous>, transform_indices = @transform_6, window_bounds = array<i64: 1, 64>}, {pipeline_mode = #tpu.pipeline_mode<synchronous>, transform_indices = @transform_7, window_bounds = array<i64: 64, 160>}, {pipeline_mode = #tpu.pipeline_mode<synchronous>, transform_indices = @transform_8, window_bounds = array<i64: 128, 64>}, {pipeline_mode = #tpu.pipeline_mode<synchronous>, transform_indices = @transform_9, window_bounds = array<i64: 1, 64>}, {pipeline_mode = #tpu.pipeline_mode<synchronous>, transform_indices = @transform_10, window_bounds = array<i64: 16, 64>}, {pipeline_mode = #tpu.pipeline_mode<synchronous>, transform_indices = @transform_11, window_bounds = array<i64: 1, 64>}, {pipeline_mode = #tpu.pipeline_mode<synchronous>, transform_indices = @transform_12, window_bounds = array<i64: 64, 32>}, {pipeline_mode = #tpu.pipeline_mode<synchronous>, transform_indices = @transform_13, window_bounds = array<i64: 1, 32>}, {pipeline_mode = #tpu.pipeline_mode<synchronous>, transform_indices = @transform_14, window_bounds = array<i64: 1, 32>}, {transform_indices = @transform_15, window_bounds = array<i64: 1, 8, 32>}, {transform_indices = @transform_16, window_bounds = array<i64: 1, 8, 32>}]} {
    %c0 = arith.constant 0 : index
    %c0_0 = arith.constant 0 : index
    %c0_1 = arith.constant 0 : index
    %0 = vector.load %arg2[%c0, %c0_0, %c0_1] : memref<1x8x32xf32, #tpu.memory_space<vmem>>, vector<1x8x32xf32>
    %1 = vector.shape_cast %0 : vector<1x8x32xf32> to vector<8x32xf32>
    %c0_2 = arith.constant 0 : index
    %c0_3 = arith.constant 0 : index
    %c0_4 = arith.constant 0 : index
    %2 = vector.load %arg3[%c0_2, %c0_3, %c0_4] : memref<1x8x32xf32, #tpu.memory_space<vmem>>, vector<1x8x32xf32>
    %3 = vector.shape_cast %2 : vector<1x8x32xf32> to vector<8x32xf32>
    %4 = arith.addf %1, %3 : vector<8x32xf32>
    %c0_5 = arith.constant 0 : index
    %c0_6 = arith.constant 0 : index
    %c0_7 = arith.constant 0 : index
    %5 = vector.load %arg18[%c0_5, %c0_6, %c0_7] : memref<1x8x32xf32, #tpu.memory_space<vmem>>, vector<1x8x32xf32>
    %6 = vector.shape_cast %5 : vector<1x8x32xf32> to vector<8x32xf32>
    %7 = vector.shape_cast %4 : vector<8x32xf32> to vector<1x8x32xf32>
    tpu.vector_store %arg18[%c0_5, %c0_6, %c0_7], %7 {strides = array<i32>} : memref<1x8x32xf32, #tpu.memory_space<vmem>>, vector<1x8x32xf32>,
    %c0_8 = arith.constant 0 : index
    %c0_9 = arith.constant 0 : index
    %8 = vector.load %arg4[%c0_8, %c0_9] : memref<1x32xf32, #tpu.memory_space<vmem>>, vector<1x32xf32>
    %9 = vector.shape_cast %8 : vector<1x32xf32> to vector<32xf32>
    %c0_10 = arith.constant 0 : index
    %c0_11 = arith.constant 0 : index
    %10 = vector.load %arg5[%c0_10, %c0_11] : memref<1x32xf32, #tpu.memory_space<vmem>>, vector<1x32xf32>
    %11 = vector.shape_cast %10 : vector<1x32xf32> to vector<32xf32>
    %cst = arith.constant dense<0.000000e+00> : vector<8xf32>
    %12 = vector.multi_reduction <add>, %4, %cst [1] : vector<8x32xf32> to vector<8xf32>
    %13 = vector.shape_cast %12 : vector<8xf32> to vector<8x1xf32>
    %cst_12 = arith.constant 3.200000e+01 : f32
    %14 = vector.broadcast %cst_12 : f32 to vector<8x1xf32>
    %15 = arith.divf %13, %14 : vector<8x1xf32>
    %16 = vector.broadcast %15 : vector<8x1xf32> to vector<8x32xf32>
    %17 = arith.subf %4, %16 : vector<8x32xf32>
    %18 = arith.mulf %17, %17 : vector<8x32xf32>
    %cst_13 = arith.constant dense<0.000000e+00> : vector<8xf32>
    %19 = vector.multi_reduction <add>, %18, %cst_13 [1] : vector<8x32xf32> to vector<8xf32>
    %20 = vector.shape_cast %19 : vector<8xf32> to vector<8x1xf32>
    %cst_14 = arith.constant 3.200000e+01 : f32
    %21 = vector.broadcast %cst_14 : f32 to vector<8x1xf32>
    %22 = arith.divf %20, %21 : vector<8x1xf32>
    %cst_15 = arith.constant 9.99999974E-6 : f32
    %23 = vector.broadcast %cst_15 : f32 to vector<8x1xf32>
    %24 = arith.addf %22, %23 : vector<8x1xf32>
    %25 = math.rsqrt %24 : vector<8x1xf32>
    %26 = vector.broadcast %25 : vector<8x1xf32> to vector<8x32xf32>
    %27 = arith.mulf %17, %26 : vector<8x32xf32>
    %28 = vector.shape_cast %9 : vector<32xf32> to vector<1x32xf32>
    %29 = vector.broadcast %28 : vector<1x32xf32> to vector<8x32xf32>
    %30 = arith.mulf %27, %29 : vector<8x32xf32>
    %31 = vector.shape_cast %11 : vector<32xf32> to vector<1x32xf32>
    %32 = vector.broadcast %31 : vector<1x32xf32> to vector<8x32xf32>
    %33 = arith.addf %30, %32 : vector<8x32xf32>
    %34 = arith.truncf %33 : vector<8x32xf32> to vector<8x32xbf16>
    %c0_16 = arith.constant 0 : index
    %c0_17 = arith.constant 0 : index
    %35 = vector.load %arg6[%c0_16, %c0_17] : memref<32x128xbf16, #tpu.memory_space<vmem>>, vector<32x128xbf16>
    %cst_18 = arith.constant dense<0.000000e+00> : vector<8x128xf32>
    %36 = tpu.matmul %34, %35, %cst_18 {dimension_numbers = #tpu.dot_dimension_numbers<[1], [0], [0], [1], [0, 0, 1, 1], [], []>} : vector<8x32xbf16>, vector<32x128xbf16>, vector<8x128xf32> -> vector<8x128xf32>
    %37 = vector.extract_strided_slice %36 {offsets = [0, 0], sizes = [8, 64], strides = [1, 1]} : vector<8x128xf32> to vector<8x64xf32>
    %38 = vector.extract_strided_slice %36 {offsets = [0, 64], sizes = [8, 64], strides = [1, 1]} : vector<8x128xf32> to vector<8x64xf32>
    %c0_i32 = arith.constant 0 : i32
    %39 = arith.cmpi eq, %arg1, %c0_i32 : i32
    %40 = arith.extui %39 : i1 to i32
    %c0_i32_19 = arith.constant 0 : i32
    %41 = arith.cmpi ne, %40, %c0_i32_19 : i32
    scf.if %41 {
      %cst_93 = arith.constant 0.000000e+00 : f32
      %280 = vector.broadcast %cst_93 : f32 to vector<8x64xf32>
      %c0_94 = arith.constant 0 : index
      %c0_95 = arith.constant 0 : index
      %281 = vector.load %arg20[%c0_94, %c0_95] : memref<8x64xf32, #tpu.memory_space<vmem>>, vector<8x64xf32>
      tpu.vector_store %arg20[%c0_94, %c0_95], %280 {strides = array<i32>} : memref<8x64xf32, #tpu.memory_space<vmem>>, vector<8x64xf32>,
      %cst_96 = arith.constant 0.000000e+00 : f32
      %282 = vector.broadcast %cst_96 : f32 to vector<16x64xf32>
      %c0_97 = arith.constant 0 : index
      %c0_98 = arith.constant 0 : index
      %283 = vector.load %arg19[%c0_97, %c0_98] : memref<16x64xf32, #tpu.memory_space<vmem>>, vector<16x64xf32>
      tpu.vector_store %arg19[%c0_97, %c0_98], %282 {strides = array<i32>} : memref<16x64xf32, #tpu.memory_space<vmem>>, vector<16x64xf32>,
    } else {
    }
    %c0_20 = arith.constant 0 : index
    %c0_21 = arith.constant 0 : index
    %42 = vector.load %arg20[%c0_20, %c0_21] : memref<8x64xf32, #tpu.memory_space<vmem>>, vector<8x64xf32>
    %c0_22 = arith.constant 0 : index
    %c0_23 = arith.constant 0 : index
    %43 = vector.load %arg21[%c0_22, %c0_23] : memref<16x64xf32, #tpu.memory_space<vmem>>, vector<8x64xf32>
    tpu.vector_store %arg21[%c0_22, %c0_23], %42 {strides = array<i32>} : memref<16x64xf32, #tpu.memory_space<vmem>>, vector<8x64xf32>,
    %c8 = arith.constant 8 : index
    %c0_24 = arith.constant 0 : index
    %44 = vector.load %arg21[%c8, %c0_24] : memref<16x64xf32, #tpu.memory_space<vmem>>, vector<8x64xf32>
    tpu.vector_store %arg21[%c8, %c0_24], %37 {strides = array<i32>} : memref<16x64xf32, #tpu.memory_space<vmem>>, vector<8x64xf32>,
    %c8_25 = arith.constant 8 : index
    %c0_26 = arith.constant 0 : index
    %45 = vector.load %arg21[%c8_25, %c0_26] : memref<16x64xf32, #tpu.memory_space<vmem>>, vector<8x64xf32>
    %c0_27 = arith.constant 0 : index
    %c0_28 = arith.constant 0 : index
    %46 = vector.load %arg20[%c0_27, %c0_28] : memref<8x64xf32, #tpu.memory_space<vmem>>, vector<8x64xf32>
    tpu.vector_store %arg20[%c0_27, %c0_28], %45 {strides = array<i32>} : memref<8x64xf32, #tpu.memory_space<vmem>>, vector<8x64xf32>,
    %c0_29 = arith.constant 0 : index
    %c0_30 = arith.constant 0 : index
    %47 = vector.load %arg8[%c0_29, %c0_30] : memref<1x64xf32, #tpu.memory_space<vmem>>, vector<1x64xf32>
    %48 = vector.shape_cast %47 : vector<1x64xf32> to vector<64xf32>
    %49 = vector.shape_cast %48 : vector<64xf32> to vector<1x64xf32>
    %50 = vector.shape_cast %49 : vector<1x64xf32> to vector<1x64xf32>
    %51 = vector.broadcast %50 : vector<1x64xf32> to vector<8x64xf32>
    %c0_31 = arith.constant 0 : index
    %c0_32 = arith.constant 0 : index
    %52 = vector.load %arg7[%c0_31, %c0_32] : memref<4x64xf32, #tpu.memory_space<vmem>>, vector<1x64xf32>
    %53 = vector.shape_cast %52 : vector<1x64xf32> to vector<64xf32>
    %54 = vector.shape_cast %53 : vector<64xf32> to vector<1x64xf32>
    %c5 = arith.constant 5 : index
    %c0_33 = arith.constant 0 : index
    %55 = vector.load %arg21[%c5, %c0_33] : memref<16x64xf32, #tpu.memory_space<vmem>>, vector<8x64xf32>
    %56 = vector.broadcast %54 : vector<1x64xf32> to vector<8x64xf32>
    %57 = arith.mulf %56, %55 : vector<8x64xf32>
    %58 = arith.addf %51, %57 : vector<8x64xf32>
    %c1 = arith.constant 1 : index
    %c0_34 = arith.constant 0 : index
    %59 = vector.load %arg7[%c1, %c0_34] : memref<4x64xf32, #tpu.memory_space<vmem>>, vector<1x64xf32>
    %60 = vector.shape_cast %59 : vector<1x64xf32> to vector<64xf32>
    %61 = vector.shape_cast %60 : vector<64xf32> to vector<1x64xf32>
    %c6 = arith.constant 6 : index
    %c0_35 = arith.constant 0 : index
    %62 = vector.load %arg21[%c6, %c0_35] : memref<16x64xf32, #tpu.memory_space<vmem>>, vector<8x64xf32>
    %63 = vector.broadcast %61 : vector<1x64xf32> to vector<8x64xf32>
    %64 = arith.mulf %63, %62 : vector<8x64xf32>
    %65 = arith.addf %58, %64 : vector<8x64xf32>
    %c2 = arith.constant 2 : index
    %c0_36 = arith.constant 0 : index
    %66 = vector.load %arg7[%c2, %c0_36] : memref<4x64xf32, #tpu.memory_space<vmem>>, vector<1x64xf32>
    %67 = vector.shape_cast %66 : vector<1x64xf32> to vector<64xf32>
    %68 = vector.shape_cast %67 : vector<64xf32> to vector<1x64xf32>
    %c7 = arith.constant 7 : index
    %c0_37 = arith.constant 0 : index
    %69 = vector.load %arg21[%c7, %c0_37] : memref<16x64xf32, #tpu.memory_space<vmem>>, vector<8x64xf32>
    %70 = vector.broadcast %68 : vector<1x64xf32> to vector<8x64xf32>
    %71 = arith.mulf %70, %69 : vector<8x64xf32>
    %72 = arith.addf %65, %71 : vector<8x64xf32>
    %c3 = arith.constant 3 : index
    %c0_38 = arith.constant 0 : index
    %73 = vector.load %arg7[%c3, %c0_38] : memref<4x64xf32, #tpu.memory_space<vmem>>, vector<1x64xf32>
    %74 = vector.shape_cast %73 : vector<1x64xf32> to vector<64xf32>
    %75 = vector.shape_cast %74 : vector<64xf32> to vector<1x64xf32>
    %c8_39 = arith.constant 8 : index
    %c0_40 = arith.constant 0 : index
    %76 = vector.load %arg21[%c8_39, %c0_40] : memref<16x64xf32, #tpu.memory_space<vmem>>, vector<8x64xf32>
    %77 = vector.broadcast %75 : vector<1x64xf32> to vector<8x64xf32>
    %78 = arith.mulf %77, %76 : vector<8x64xf32>
    %79 = arith.addf %72, %78 : vector<8x64xf32>
    %cst_41 = arith.constant 0.000000e+00 : f32
    %80 = vector.broadcast %cst_41 : f32 to vector<8x64xf32>
    %81 = arith.subf %80, %79 : vector<8x64xf32>
    %82 = math.exp %81 : vector<8x64xf32>
    %cst_42 = arith.constant 1.000000e+00 : f32
    %83 = vector.broadcast %cst_42 : f32 to vector<8x64xf32>
    %84 = arith.addf %83, %82 : vector<8x64xf32>
    %cst_43 = arith.constant 1.000000e+00 : f32
    %85 = vector.broadcast %cst_43 : f32 to vector<8x64xf32>
    %86 = arith.divf %85, %84 : vector<8x64xf32>
    %87 = arith.mulf %79, %86 : vector<8x64xf32>
    %88 = arith.truncf %87 : vector<8x64xf32> to vector<8x64xbf16>
    %c0_44 = arith.constant 0 : index
    %c0_45 = arith.constant 0 : index
    %89 = vector.load %arg9[%c0_44, %c0_45] : memref<64x160xbf16, #tpu.memory_space<vmem>>, vector<64x160xbf16>
    %cst_46 = arith.constant dense<0.000000e+00> : vector<8x160xf32>
    %90 = tpu.matmul %88, %89, %cst_46 {dimension_numbers = #tpu.dot_dimension_numbers<[1], [0], [0], [1], [0, 0, 1, 1], [], []>} : vector<8x64xbf16>, vector<64x160xbf16>, vector<8x160xf32> -> vector<8x160xf32>
    %91 = vector.extract_strided_slice %90 {offsets = [0, 0], sizes = [8, 128], strides = [1, 1]} : vector<8x160xf32> to vector<8x128xf32>
    %92 = arith.truncf %91 : vector<8x128xf32> to vector<8x128xbf16>
    %c0_47 = arith.constant 0 : index
    %c0_48 = arith.constant 0 : index
    %93 = vector.load %arg10[%c0_47, %c0_48] : memref<128x64xbf16, #tpu.memory_space<vmem>>, vector<128x64xbf16>
    %cst_49 = arith.constant dense<0.000000e+00> : vector<8x64xf32>
    %94 = tpu.matmul %92, %93, %cst_49 {dimension_numbers = #tpu.dot_dimension_numbers<[1], [0], [0], [1], [0, 0, 1, 1], [], []>} : vector<8x128xbf16>, vector<128x64xbf16>, vector<8x64xf32> -> vector<8x64xf32>
    %c0_50 = arith.constant 0 : index
    %c0_51 = arith.constant 0 : index
    %95 = vector.load %arg11[%c0_50, %c0_51] : memref<1x64xf32, #tpu.memory_space<vmem>>, vector<1x64xf32>
    %96 = vector.shape_cast %95 : vector<1x64xf32> to vector<64xf32>
    %97 = vector.shape_cast %96 : vector<64xf32> to vector<1x64xf32>
    %98 = vector.broadcast %97 : vector<1x64xf32> to vector<8x64xf32>
    %99 = arith.addf %94, %98 : vector<8x64xf32>
    %cst_52 = arith.constant 2.000000e+01 : f32
    %100 = vector.broadcast %cst_52 : f32 to vector<8x64xf32>
    %101 = arith.cmpf ogt, %99, %100 : vector<8x64xf32>
    %cst_53 = arith.constant 2.000000e+01 : f32
    %102 = vector.broadcast %cst_53 : f32 to vector<8x64xf32>
    %103 = arith.minimumf %99, %102 : vector<8x64xf32>
    %104 = math.exp %103 : vector<8x64xf32>
    %105 = math.log1p %104 : vector<8x64xf32>
    %106 = arith.select %101, %99, %105 : vector<8x64xi1>, vector<8x64xf32>
    %c0_54 = arith.constant 0 : index
    %c0_55 = arith.constant 0 : index
    %107 = vector.load %arg12[%c0_54, %c0_55] : memref<16x64xf32, #tpu.memory_space<vmem>>, vector<16x64xf32>
    %108 = math.exp %107 : vector<16x64xf32>
    %cst_56 = arith.constant 0.000000e+00 : f32
    %109 = vector.broadcast %cst_56 : f32 to vector<16x64xf32>
    %110 = arith.subf %109, %108 : vector<16x64xf32>
    %c0_57 = arith.constant 0 : index
    %c0_58 = arith.constant 0 : index
    %111 = vector.load %arg22[%c0_57, %c0_58] : memref<8x64xf32, #tpu.memory_space<vmem>>, vector<8x64xf32>
    tpu.vector_store %arg22[%c0_57, %c0_58], %106 {strides = array<i32>} : memref<8x64xf32, #tpu.memory_space<vmem>>, vector<8x64xf32>,
    %112 = arith.mulf %106, %87 : vector<8x64xf32>
    %c0_59 = arith.constant 0 : index
    %c0_60 = arith.constant 0 : index
    %113 = vector.load %arg23[%c0_59, %c0_60] : memref<8x64xf32, #tpu.memory_space<vmem>>, vector<8x64xf32>
    tpu.vector_store %arg23[%c0_59, %c0_60], %112 {strides = array<i32>} : memref<8x64xf32, #tpu.memory_space<vmem>>, vector<8x64xf32>,
    %114 = vector.extract_strided_slice %90 {offsets = [0, 128], sizes = [8, 32], strides = [1, 1]} : vector<8x160xf32> to vector<8x32xf32>
    %c0_61 = arith.constant 0 : index
    %c0_62 = arith.constant 0 : index
    %115 = vector.load %arg24[%c0_61, %c0_62] : memref<8x32xf32, #tpu.memory_space<vmem>>, vector<8x32xf32>
    tpu.vector_store %arg24[%c0_61, %c0_62], %114 {strides = array<i32>} : memref<8x32xf32, #tpu.memory_space<vmem>>, vector<8x32xf32>,
    %c0_63 = arith.constant 0 : index
    %c0_64 = arith.constant 0 : index
    %116 = vector.load %arg19[%c0_63, %c0_64] : memref<16x64xf32, #tpu.memory_space<vmem>>, vector<16x64xf32>
    %c0_i32_65 = arith.constant 0 : i32
    %c8_i32 = arith.constant 8 : i32
    %117 = arith.muli %c0_i32_65, %c8_i32 : i32
    %118 = tpu.assume_multiple %117, 8 : i32
    %119 = arith.index_cast %118 : i32 to index
    %c0_66 = arith.constant 0 : index
    %120 = vector.load %arg22[%119, %c0_66] : memref<8x64xf32, #tpu.memory_space<vmem>>, vector<8x64xf32>
    %121 = arith.index_cast %118 : i32 to index
    %c0_67 = arith.constant 0 : index
    %122 = vector.load %arg23[%121, %c0_67] : memref<8x64xf32, #tpu.memory_space<vmem>>, vector<8x64xf32>
    %123 = arith.index_cast %118 : i32 to index
    %c0_68 = arith.constant 0 : index
    %124 = vector.load %arg24[%123, %c0_68] : memref<8x32xf32, #tpu.memory_space<vmem>>, vector<8x32xf32>
    %125 = tpu.transpose %124, [1, 0] : vector<8x32xf32> -> vector<32x8xf32>
    %126 = vector.extract_strided_slice %120 {offsets = [0, 0], sizes = [1, 64], strides = [1, 1]} : vector<8x64xf32> to vector<1x64xf32>
    %127 = vector.broadcast %126 : vector<1x64xf32> to vector<16x64xf32>
    %128 = arith.mulf %127, %110 : vector<16x64xf32>
    %129 = math.exp %128 : vector<16x64xf32>
    %130 = arith.mulf %129, %116 : vector<16x64xf32>
    %131 = vector.extract_strided_slice %122 {offsets = [0, 0], sizes = [1, 64], strides = [1, 1]} : vector<8x64xf32> to vector<1x64xf32>
    %132 = vector.extract_strided_slice %125 {offsets = [0, 0], sizes = [16, 1], strides = [1, 1]} : vector<32x8xf32> to vector<16x1xf32>
    %133 = vector.broadcast %131 : vector<1x64xf32> to vector<16x64xf32>
    %134 = vector.broadcast %132 : vector<16x1xf32> to vector<16x64xf32>
    %135 = arith.mulf %133, %134 : vector<16x64xf32>
    %136 = arith.addf %130, %135 : vector<16x64xf32>
    %137 = vector.extract_strided_slice %125 {offsets = [16, 0], sizes = [16, 1], strides = [1, 1]} : vector<32x8xf32> to vector<16x1xf32>
    %138 = vector.broadcast %137 : vector<16x1xf32> to vector<16x64xf32>
    %139 = arith.mulf %138, %136 : vector<16x64xf32>
    %cst_69 = arith.constant dense<0.000000e+00> : vector<64xf32>
    %140 = vector.multi_reduction <add>, %139, %cst_69 [0] : vector<16x64xf32> to vector<64xf32>
    %141 = vector.shape_cast %140 : vector<64xf32> to vector<1x64xf32>
    %142 = vector.extract_strided_slice %120 {offsets = [1, 0], sizes = [1, 64], strides = [1, 1]} : vector<8x64xf32> to vector<1x64xf32>
    %143 = vector.broadcast %142 : vector<1x64xf32> to vector<16x64xf32>
    %144 = arith.mulf %143, %110 : vector<16x64xf32>
    %145 = math.exp %144 : vector<16x64xf32>
    %146 = arith.mulf %145, %136 : vector<16x64xf32>
    %147 = vector.extract_strided_slice %122 {offsets = [1, 0], sizes = [1, 64], strides = [1, 1]} : vector<8x64xf32> to vector<1x64xf32>
    %148 = vector.extract_strided_slice %125 {offsets = [0, 1], sizes = [16, 1], strides = [1, 1]} : vector<32x8xf32> to vector<16x1xf32>
    %149 = vector.broadcast %147 : vector<1x64xf32> to vector<16x64xf32>
    %150 = vector.broadcast %148 : vector<16x1xf32> to vector<16x64xf32>
    %151 = arith.mulf %149, %150 : vector<16x64xf32>
    %152 = arith.addf %146, %151 : vector<16x64xf32>
    %153 = vector.extract_strided_slice %125 {offsets = [16, 1], sizes = [16, 1], strides = [1, 1]} : vector<32x8xf32> to vector<16x1xf32>
    %154 = vector.broadcast %153 : vector<16x1xf32> to vector<16x64xf32>
    %155 = arith.mulf %154, %152 : vector<16x64xf32>
    %cst_70 = arith.constant dense<0.000000e+00> : vector<64xf32>
    %156 = vector.multi_reduction <add>, %155, %cst_70 [0] : vector<16x64xf32> to vector<64xf32>
    %157 = vector.shape_cast %156 : vector<64xf32> to vector<1x64xf32>
    %158 = vector.extract_strided_slice %120 {offsets = [2, 0], sizes = [1, 64], strides = [1, 1]} : vector<8x64xf32> to vector<1x64xf32>
    %159 = vector.broadcast %158 : vector<1x64xf32> to vector<16x64xf32>
    %160 = arith.mulf %159, %110 : vector<16x64xf32>
    %161 = math.exp %160 : vector<16x64xf32>
    %162 = arith.mulf %161, %152 : vector<16x64xf32>
    %163 = vector.extract_strided_slice %122 {offsets = [2, 0], sizes = [1, 64], strides = [1, 1]} : vector<8x64xf32> to vector<1x64xf32>
    %164 = vector.extract_strided_slice %125 {offsets = [0, 2], sizes = [16, 1], strides = [1, 1]} : vector<32x8xf32> to vector<16x1xf32>
    %165 = vector.broadcast %163 : vector<1x64xf32> to vector<16x64xf32>
    %166 = vector.broadcast %164 : vector<16x1xf32> to vector<16x64xf32>
    %167 = arith.mulf %165, %166 : vector<16x64xf32>
    %168 = arith.addf %162, %167 : vector<16x64xf32>
    %169 = vector.extract_strided_slice %125 {offsets = [16, 2], sizes = [16, 1], strides = [1, 1]} : vector<32x8xf32> to vector<16x1xf32>
    %170 = vector.broadcast %169 : vector<16x1xf32> to vector<16x64xf32>
    %171 = arith.mulf %170, %168 : vector<16x64xf32>
    %cst_71 = arith.constant dense<0.000000e+00> : vector<64xf32>
    %172 = vector.multi_reduction <add>, %171, %cst_71 [0] : vector<16x64xf32> to vector<64xf32>
    %173 = vector.shape_cast %172 : vector<64xf32> to vector<1x64xf32>
    %174 = vector.extract_strided_slice %120 {offsets = [3, 0], sizes = [1, 64], strides = [1, 1]} : vector<8x64xf32> to vector<1x64xf32>
    %175 = vector.broadcast %174 : vector<1x64xf32> to vector<16x64xf32>
    %176 = arith.mulf %175, %110 : vector<16x64xf32>
    %177 = math.exp %176 : vector<16x64xf32>
    %178 = arith.mulf %177, %168 : vector<16x64xf32>
    %179 = vector.extract_strided_slice %122 {offsets = [3, 0], sizes = [1, 64], strides = [1, 1]} : vector<8x64xf32> to vector<1x64xf32>
    %180 = vector.extract_strided_slice %125 {offsets = [0, 3], sizes = [16, 1], strides = [1, 1]} : vector<32x8xf32> to vector<16x1xf32>
    %181 = vector.broadcast %179 : vector<1x64xf32> to vector<16x64xf32>
    %182 = vector.broadcast %180 : vector<16x1xf32> to vector<16x64xf32>
    %183 = arith.mulf %181, %182 : vector<16x64xf32>
    %184 = arith.addf %178, %183 : vector<16x64xf32>
    %185 = vector.extract_strided_slice %125 {offsets = [16, 3], sizes = [16, 1], strides = [1, 1]} : vector<32x8xf32> to vector<16x1xf32>
    %186 = vector.broadcast %185 : vector<16x1xf32> to vector<16x64xf32>
    %187 = arith.mulf %186, %184 : vector<16x64xf32>
    %cst_72 = arith.constant dense<0.000000e+00> : vector<64xf32>
    %188 = vector.multi_reduction <add>, %187, %cst_72 [0] : vector<16x64xf32> to vector<64xf32>
    %189 = vector.shape_cast %188 : vector<64xf32> to vector<1x64xf32>
    %190 = vector.extract_strided_slice %120 {offsets = [4, 0], sizes = [1, 64], strides = [1, 1]} : vector<8x64xf32> to vector<1x64xf32>
    %191 = vector.broadcast %190 : vector<1x64xf32> to vector<16x64xf32>
    %192 = arith.mulf %191, %110 : vector<16x64xf32>
    %193 = math.exp %192 : vector<16x64xf32>
    %194 = arith.mulf %193, %184 : vector<16x64xf32>
    %195 = vector.extract_strided_slice %122 {offsets = [4, 0], sizes = [1, 64], strides = [1, 1]} : vector<8x64xf32> to vector<1x64xf32>
    %196 = vector.extract_strided_slice %125 {offsets = [0, 4], sizes = [16, 1], strides = [1, 1]} : vector<32x8xf32> to vector<16x1xf32>
    %197 = vector.broadcast %195 : vector<1x64xf32> to vector<16x64xf32>
    %198 = vector.broadcast %196 : vector<16x1xf32> to vector<16x64xf32>
    %199 = arith.mulf %197, %198 : vector<16x64xf32>
    %200 = arith.addf %194, %199 : vector<16x64xf32>
    %201 = vector.extract_strided_slice %125 {offsets = [16, 4], sizes = [16, 1], strides = [1, 1]} : vector<32x8xf32> to vector<16x1xf32>
    %202 = vector.broadcast %201 : vector<16x1xf32> to vector<16x64xf32>
    %203 = arith.mulf %202, %200 : vector<16x64xf32>
    %cst_73 = arith.constant dense<0.000000e+00> : vector<64xf32>
    %204 = vector.multi_reduction <add>, %203, %cst_73 [0] : vector<16x64xf32> to vector<64xf32>
    %205 = vector.shape_cast %204 : vector<64xf32> to vector<1x64xf32>
    %206 = vector.extract_strided_slice %120 {offsets = [5, 0], sizes = [1, 64], strides = [1, 1]} : vector<8x64xf32> to vector<1x64xf32>
    %207 = vector.broadcast %206 : vector<1x64xf32> to vector<16x64xf32>
    %208 = arith.mulf %207, %110 : vector<16x64xf32>
    %209 = math.exp %208 : vector<16x64xf32>
    %210 = arith.mulf %209, %200 : vector<16x64xf32>
    %211 = vector.extract_strided_slice %122 {offsets = [5, 0], sizes = [1, 64], strides = [1, 1]} : vector<8x64xf32> to vector<1x64xf32>
    %212 = vector.extract_strided_slice %125 {offsets = [0, 5], sizes = [16, 1], strides = [1, 1]} : vector<32x8xf32> to vector<16x1xf32>
    %213 = vector.broadcast %211 : vector<1x64xf32> to vector<16x64xf32>
    %214 = vector.broadcast %212 : vector<16x1xf32> to vector<16x64xf32>
    %215 = arith.mulf %213, %214 : vector<16x64xf32>
    %216 = arith.addf %210, %215 : vector<16x64xf32>
    %217 = vector.extract_strided_slice %125 {offsets = [16, 5], sizes = [16, 1], strides = [1, 1]} : vector<32x8xf32> to vector<16x1xf32>
    %218 = vector.broadcast %217 : vector<16x1xf32> to vector<16x64xf32>
    %219 = arith.mulf %218, %216 : vector<16x64xf32>
    %cst_74 = arith.constant dense<0.000000e+00> : vector<64xf32>
    %220 = vector.multi_reduction <add>, %219, %cst_74 [0] : vector<16x64xf32> to vector<64xf32>
    %221 = vector.shape_cast %220 : vector<64xf32> to vector<1x64xf32>
    %222 = vector.extract_strided_slice %120 {offsets = [6, 0], sizes = [1, 64], strides = [1, 1]} : vector<8x64xf32> to vector<1x64xf32>
    %223 = vector.broadcast %222 : vector<1x64xf32> to vector<16x64xf32>
    %224 = arith.mulf %223, %110 : vector<16x64xf32>
    %225 = math.exp %224 : vector<16x64xf32>
    %226 = arith.mulf %225, %216 : vector<16x64xf32>
    %227 = vector.extract_strided_slice %122 {offsets = [6, 0], sizes = [1, 64], strides = [1, 1]} : vector<8x64xf32> to vector<1x64xf32>
    %228 = vector.extract_strided_slice %125 {offsets = [0, 6], sizes = [16, 1], strides = [1, 1]} : vector<32x8xf32> to vector<16x1xf32>
    %229 = vector.broadcast %227 : vector<1x64xf32> to vector<16x64xf32>
    %230 = vector.broadcast %228 : vector<16x1xf32> to vector<16x64xf32>
    %231 = arith.mulf %229, %230 : vector<16x64xf32>
    %232 = arith.addf %226, %231 : vector<16x64xf32>
    %233 = vector.extract_strided_slice %125 {offsets = [16, 6], sizes = [16, 1], strides = [1, 1]} : vector<32x8xf32> to vector<16x1xf32>
    %234 = vector.broadcast %233 : vector<16x1xf32> to vector<16x64xf32>
    %235 = arith.mulf %234, %232 : vector<16x64xf32>
    %cst_75 = arith.constant dense<0.000000e+00> : vector<64xf32>
    %236 = vector.multi_reduction <add>, %235, %cst_75 [0] : vector<16x64xf32> to vector<64xf32>
    %237 = vector.shape_cast %236 : vector<64xf32> to vector<1x64xf32>
    %238 = vector.extract_strided_slice %120 {offsets = [7, 0], sizes = [1, 64], strides = [1, 1]} : vector<8x64xf32> to vector<1x64xf32>
    %239 = vector.broadcast %238 : vector<1x64xf32> to vector<16x64xf32>
    %240 = arith.mulf %239, %110 : vector<16x64xf32>
    %241 = math.exp %240 : vector<16x64xf32>
    %242 = arith.mulf %241, %232 : vector<16x64xf32>
    %243 = vector.extract_strided_slice %122 {offsets = [7, 0], sizes = [1, 64], strides = [1, 1]} : vector<8x64xf32> to vector<1x64xf32>
    %244 = vector.extract_strided_slice %125 {offsets = [0, 7], sizes = [16, 1], strides = [1, 1]} : vector<32x8xf32> to vector<16x1xf32>
    %245 = vector.broadcast %243 : vector<1x64xf32> to vector<16x64xf32>
    %246 = vector.broadcast %244 : vector<16x1xf32> to vector<16x64xf32>
    %247 = arith.mulf %245, %246 : vector<16x64xf32>
    %248 = arith.addf %242, %247 : vector<16x64xf32>
    %249 = vector.extract_strided_slice %125 {offsets = [16, 7], sizes = [16, 1], strides = [1, 1]} : vector<32x8xf32> to vector<16x1xf32>
    %250 = vector.broadcast %249 : vector<16x1xf32> to vector<16x64xf32>
    %251 = arith.mulf %250, %248 : vector<16x64xf32>
    %cst_76 = arith.constant dense<0.000000e+00> : vector<64xf32>
    %252 = vector.multi_reduction <add>, %251, %cst_76 [0] : vector<16x64xf32> to vector<64xf32>
    %253 = vector.shape_cast %252 : vector<64xf32> to vector<1x64xf32>
    %254 = tpu.concatenate %141, %157, %173, %189, %205, %221, %237, %253 in 0 : vector<1x64xf32>, vector<1x64xf32>, vector<1x64xf32>, vector<1x64xf32>, vector<1x64xf32>, vector<1x64xf32>, vector<1x64xf32>, vector<1x64xf32> -> vector<8x64xf32>
    %255 = arith.index_cast %118 : i32 to index
    %c0_77 = arith.constant 0 : index
    %256 = vector.load %arg25[%255, %c0_77] : memref<8x64xf32, #tpu.memory_space<vmem>>, vector<8x64xf32>
    tpu.vector_store %arg25[%255, %c0_77], %254 {strides = array<i32>} : memref<8x64xf32, #tpu.memory_space<vmem>>, vector<8x64xf32>,
    %c1_i32 = arith.constant 1 : i32
    %c0_78 = arith.constant 0 : index
    %c0_79 = arith.constant 0 : index
    %257 = vector.load %arg19[%c0_78, %c0_79] : memref<16x64xf32, #tpu.memory_space<vmem>>, vector<16x64xf32>
    tpu.vector_store %arg19[%c0_78, %c0_79], %248 {strides = array<i32>} : memref<16x64xf32, #tpu.memory_space<vmem>>, vector<16x64xf32>,
    %c0_80 = arith.constant 0 : index
    %c0_81 = arith.constant 0 : index
    %258 = vector.load %arg25[%c0_80, %c0_81] : memref<8x64xf32, #tpu.memory_space<vmem>>, vector<8x64xf32>
    %c0_82 = arith.constant 0 : index
    %c0_83 = arith.constant 0 : index
    %259 = vector.load %arg13[%c0_82, %c0_83] : memref<1x64xf32, #tpu.memory_space<vmem>>, vector<1x64xf32>
    %260 = vector.shape_cast %259 : vector<1x64xf32> to vector<64xf32>
    %261 = vector.shape_cast %260 : vector<64xf32> to vector<1x64xf32>
    %262 = vector.broadcast %261 : vector<1x64xf32> to vector<8x64xf32>
    %263 = arith.mulf %87, %262 : vector<8x64xf32>
    %264 = arith.addf %258, %263 : vector<8x64xf32>
    %cst_84 = arith.constant 0.000000e+00 : f32
    %265 = vector.broadcast %cst_84 : f32 to vector<8x64xf32>
    %266 = arith.subf %265, %38 : vector<8x64xf32>
    %267 = math.exp %266 : vector<8x64xf32>
    %cst_85 = arith.constant 1.000000e+00 : f32
    %268 = vector.broadcast %cst_85 : f32 to vector<8x64xf32>
    %269 = arith.addf %268, %267 : vector<8x64xf32>
    %cst_86 = arith.constant 1.000000e+00 : f32
    %270 = vector.broadcast %cst_86 : f32 to vector<8x64xf32>
    %271 = arith.divf %270, %269 : vector<8x64xf32>
    %272 = arith.mulf %38, %271 : vector<8x64xf32>
    %273 = arith.mulf %264, %272 : vector<8x64xf32>
    %274 = arith.truncf %273 : vector<8x64xf32> to vector<8x64xbf16>
    %c0_87 = arith.constant 0 : index
    %c0_88 = arith.constant 0 : index
    %275 = vector.load %arg14[%c0_87, %c0_88] : memref<64x32xbf16, #tpu.memory_space<vmem>>, vector<64x32xbf16>
    %cst_89 = arith.constant dense<0.000000e+00> : vector<8x32xf32>
    %276 = tpu.matmul %274, %275, %cst_89 {dimension_numbers = #tpu.dot_dimension_numbers<[1], [0], [0], [1], [0, 0, 1, 1], [], []>} : vector<8x64xbf16>, vector<64x32xbf16>, vector<8x32xf32> -> vector<8x32xf32>
    %c0_90 = arith.constant 0 : index
    %c0_91 = arith.constant 0 : index
    %c0_92 = arith.constant 0 : index
    %277 = vector.load %arg17[%c0_90, %c0_91, %c0_92] : memref<1x8x32xf32, #tpu.memory_space<vmem>>, vector<1x8x32xf32>
    %278 = vector.shape_cast %277 : vector<1x8x32xf32> to vector<8x32xf32>
    %279 = vector.shape_cast %276 : vector<8x32xf32> to vector<1x8x32xf32>
    tpu.vector_store %arg17[%c0_90, %c0_91, %c0_92], %279 {strides = array<i32>} : memref<1x8x32xf32, #tpu.memory_space<vmem>>, vector<1x8x32xf32>,
    return
  }
  func.func @transform_0(%arg0: i32, %arg1: i32) -> (i32, i32, i32) {
    %c0_i32 = arith.constant 0 : i32
    %c0_i32_0 = arith.constant 0 : i32
    return %arg0, %arg1, %c0_i32 : i32, i32, i32
  }
  func.func @transform_1(%arg0: i32, %arg1: i32) -> (i32, i32, i32) {
    %c0_i32 = arith.constant 0 : i32
    %c0_i32_0 = arith.constant 0 : i32
    return %arg0, %arg1, %c0_i32 : i32, i32, i32
  }
  func.func @transform_2(%arg0: i32, %arg1: i32) -> (i32, i32) {
    %c0_i32 = arith.constant 0 : i32
    %c0_i32_0 = arith.constant 0 : i32
    %c0_i32_1 = arith.constant 0 : i32
    return %c0_i32, %c0_i32_0 : i32, i32
  }
  func.func @transform_3(%arg0: i32, %arg1: i32) -> (i32, i32) {
    %c0_i32 = arith.constant 0 : i32
    %c0_i32_0 = arith.constant 0 : i32
    %c0_i32_1 = arith.constant 0 : i32
    return %c0_i32, %c0_i32_0 : i32, i32
  }
  func.func @transform_4(%arg0: i32, %arg1: i32) -> (i32, i32) {
    %c0_i32 = arith.constant 0 : i32
    %c0_i32_0 = arith.constant 0 : i32
    %c0_i32_1 = arith.constant 0 : i32
    return %c0_i32, %c0_i32_0 : i32, i32
  }
  func.func @transform_5(%arg0: i32, %arg1: i32) -> (i32, i32) {
    %c0_i32 = arith.constant 0 : i32
    %c0_i32_0 = arith.constant 0 : i32
    %c0_i32_1 = arith.constant 0 : i32
    return %c0_i32, %c0_i32_0 : i32, i32
  }
  func.func @transform_6(%arg0: i32, %arg1: i32) -> (i32, i32) {
    %c0_i32 = arith.constant 0 : i32
    %c0_i32_0 = arith.constant 0 : i32
    %c0_i32_1 = arith.constant 0 : i32
    return %c0_i32, %c0_i32_0 : i32, i32
  }
  func.func @transform_7(%arg0: i32, %arg1: i32) -> (i32, i32) {
    %c0_i32 = arith.constant 0 : i32
    %c0_i32_0 = arith.constant 0 : i32
    %c0_i32_1 = arith.constant 0 : i32
    return %c0_i32, %c0_i32_0 : i32, i32
  }
  func.func @transform_8(%arg0: i32, %arg1: i32) -> (i32, i32) {
    %c0_i32 = arith.constant 0 : i32
    %c0_i32_0 = arith.constant 0 : i32
    %c0_i32_1 = arith.constant 0 : i32
    return %c0_i32, %c0_i32_0 : i32, i32
  }
  func.func @transform_9(%arg0: i32, %arg1: i32) -> (i32, i32) {
    %c0_i32 = arith.constant 0 : i32
    %c0_i32_0 = arith.constant 0 : i32
    %c0_i32_1 = arith.constant 0 : i32
    return %c0_i32, %c0_i32_0 : i32, i32
  }
  func.func @transform_10(%arg0: i32, %arg1: i32) -> (i32, i32) {
    %c0_i32 = arith.constant 0 : i32
    %c0_i32_0 = arith.constant 0 : i32
    %c0_i32_1 = arith.constant 0 : i32
    return %c0_i32, %c0_i32_0 : i32, i32
  }
  func.func @transform_11(%arg0: i32, %arg1: i32) -> (i32, i32) {
    %c0_i32 = arith.constant 0 : i32
    %c0_i32_0 = arith.constant 0 : i32
    %c0_i32_1 = arith.constant 0 : i32
    return %c0_i32, %c0_i32_0 : i32, i32
  }
  func.func @transform_12(%arg0: i32, %arg1: i32) -> (i32, i32) {
    %c0_i32 = arith.constant 0 : i32
    %c0_i32_0 = arith.constant 0 : i32
    %c0_i32_1 = arith.constant 0 : i32
    return %c0_i32, %c0_i32_0 : i32, i32
  }
  func.func @transform_13(%arg0: i32, %arg1: i32) -> (i32, i32) {
    %c0_i32 = arith.constant 0 : i32
    %c0_i32_0 = arith.constant 0 : i32
    %c0_i32_1 = arith.constant 0 : i32
    return %c0_i32, %c0_i32_0 : i32, i32
  }
  func.func @transform_14(%arg0: i32, %arg1: i32) -> (i32, i32) {
    %c0_i32 = arith.constant 0 : i32
    %c0_i32_0 = arith.constant 0 : i32
    %c0_i32_1 = arith.constant 0 : i32
    return %c0_i32, %c0_i32_0 : i32, i32
  }
  func.func @transform_15(%arg0: i32, %arg1: i32) -> (i32, i32, i32) {
    %c0_i32 = arith.constant 0 : i32
    %c0_i32_0 = arith.constant 0 : i32
    return %arg0, %arg1, %c0_i32 : i32, i32, i32
  }
  func.func @transform_16(%arg0: i32, %arg1: i32) -> (i32, i32, i32) {
    %c0_i32 = arith.constant 0 : i32
    %c0_i32_0 = arith.constant 0 : i32
    return %arg0, %arg1, %c0_i32 : i32, i32, i32
  }
}

</mosaic_0001>

<llo_original>
// kernel: tpu_custom_call.1
$region0: #{tpu_custom_call.1}
  #allocation0 [shape = 'u32[]', space=smem, size = 0x4, offset = 0x4, fixed_abs, tag = 'smem constant byte address 0x4 - core index']
  #allocation1 [shape = 'u32[144,128]{1,0:T(1,128)}', space=vmem, size = 0x12000, scoped, tag = 'internal scratch']
  #allocation2 [shape = 'f32[16,64]{1,0:T(8,128)}', space=vmem, size = 0x2000, scoped, tag = 'scratch operand']
  #allocation3 [shape = 'f32[8,64]{1,0:T(8,128)}', space=vmem, size = 0x1000, scoped, tag = 'scratch operand']
  #allocation4 [shape = 'f32[16,64]{1,0:T(8,128)}', space=vmem, size = 0x2000, scoped, tag = 'scratch operand']
  #allocation5 [shape = 'f32[8,64]{1,0:T(8,128)}', space=vmem, size = 0x1000, scoped, tag = 'scratch operand']
  #allocation6 [shape = 'f32[8,64]{1,0:T(8,128)}', space=vmem, size = 0x1000, scoped, tag = 'scratch operand']
  #allocation7 [shape = 'f32[8,32]{1,0:T(8,128)}', space=vmem, size = 0x1000, scoped, tag = 'scratch operand']
  #allocation8 [shape = 'f32[8,64]{1,0:T(8,128)}', space=vmem, size = 0x1000, scoped, tag = 'scratch operand']
  %s0 = inlined_call_operand.vmem [shape: f32[2,8,32], index: 0, kind: input, shape index: {}]
  %s1 = inlined_call_operand.vmem [shape: f32[2,8,32], index: 1, kind: input, shape index: {}]
  %s2 = inlined_call_operand.vmem [shape: f32[1,32], index: 2, kind: input, shape index: {}]
  %s3 = inlined_call_operand.hbm [shape: f32[1,32], index: 3, kind: input, shape index: {}]
  %s4 = inlined_call_operand.vmem [shape: bf16[32,128], index: 4, kind: input, shape index: {}]
  %s5 = inlined_call_operand.vmem [shape: f32[4,64], index: 5, kind: input, shape index: {}]
  %s6 = inlined_call_operand.hbm [shape: f32[1,64], index: 6, kind: input, shape index: {}]
  %s7 = inlined_call_operand.vmem [shape: bf16[64,160], index: 7, kind: input, shape index: {}]
  %s8 = inlined_call_operand.vmem [shape: bf16[128,64], index: 8, kind: input, shape index: {}]
  %s9 = inlined_call_operand.hbm [shape: f32[1,64], index: 9, kind: input, shape index: {}]
  %s10 = inlined_call_operand.hbm [shape: f32[16,64], index: 10, kind: input, shape index: {}]
  %s11 = inlined_call_operand.hbm [shape: f32[1,64], index: 11, kind: input, shape index: {}]
  %s12 = inlined_call_operand.vmem [shape: bf16[64,32], index: 12, kind: input, shape index: {}]
  %s13 = inlined_call_operand.vmem [shape: f32[1,32], index: 13, kind: input, shape index: {}]
  %s14 = inlined_call_operand.vmem [shape: f32[1,32], index: 14, kind: input, shape index: {}]
  %s15 = inlined_call_operand.hbm [shape: f32[2,8,32], index: 15, kind: output, shape index: {0}]
  %s16 = inlined_call_operand.hbm [shape: f32[2,8,32], index: 16, kind: output, shape index: {1}]
  %17 = xla_tuple %s15, %s16
  %s18 = sld [smem:[#allocation0]]
  $region125: #{tpu_custom_call.1} parent=0
    _
  %s20 = ssub.s32 1, %s18
  %s21 = scalar_select 0, %s20, %s18
  $region1: #{tpu_custom_call.1} parent=0
    #allocation9 [shape = 'u8[512]{0}', space=vmem, size = 0x400, scoped, tag = 'input window, operand 3, single buffered']
    #allocation10 [shape = 's32[2]{0}', space=sflag, size = 0x8, scoped, tag = 'scoped memory for tpu_custom_call.1']
    #allocation11 [shape = 's32[2]{0}', space=sflag, size = 0x8, scoped, tag = 'scoped memory for tpu_custom_call.1']
    #allocation12 [shape = 'u8[512]{0}', space=vmem, size = 0x400, scoped, tag = 'input window, operand 6, single buffered']
    #allocation13 [shape = 's32[1]{0}', space=sflag, size = 0x4, scoped, tag = 'scoped memory for tpu_custom_call.1']
    #allocation14 [shape = 'u8[512]{0}', space=vmem, size = 0x400, scoped, tag = 'input window, operand 9, single buffered']
    #allocation15 [shape = 'u8[8192]{0}', space=vmem, size = 0x2000, scoped, tag = 'input window, operand 10, single buffered']
    #allocation16 [shape = 's32[1]{0}', space=sflag, size = 0x4, scoped, tag = 'scoped memory for tpu_custom_call.1']
    #allocation17 [shape = 'u8[512]{0}', space=vmem, size = 0x400, scoped, tag = 'input window, operand 11, single buffered']
    #allocation18 [shape = 'u8[8192]{0}', space=vmem, size = 0x2000, scoped, tag = 'output window, operand 0']
    #allocation19 [shape = 'u8[8192]{0}', space=vmem, size = 0x2000, scoped, tag = 'output window, operand 1']
    #allocation20 [shape = 's32[2]{0}', space=sflag, size = 0x8, scoped, tag = 'scoped memory for tpu_custom_call.1']
    %22 = vsyncpa [#allocation10], 0
    %23 = vsyncpa [#allocation13], 0
    %24 = vsyncpa [#allocation16], 0
    %25 = vsyncpa [#allocation11], 0
    %s26 = scalar_lea.sflag [#allocation11], 1
    %27 = vsyncpa %s26, 0
    %28 = vsyncpa [#allocation20], 0
    %s29 = scalar_lea.sflag [#allocation20], 1
    %30 = vsyncpa %s29, 0
    loop: start=0, step=1, limit=4
    $region2: #{tpu_custom_call.1} parent=1 // loop_pre_header
      _
    $region3: #{tpu_custom_call.1} parent=1 // loop_header
      %s32 = sphi 0, %s36
      %p33 = scmp.ge.s32.totalorder %s32, 4
      %s39 = sphi 0, %s51
      %s40 = sphi 0, %s47
      %s41 = sphi 0, %s39
      %s42 = sphi 0, %s40
      %s43 = sphi 0, %s41
      %s44 = sphi 0, %s42
      %s56 = sphi 0, %s58
      %s59 = sphi 0, %s56
      %s60 = sphi 0, %s59
      %s76 = sphi 0, %s60
      %s84 = sphi 0, %s86
      %s87 = sphi 0, %s84
      %s88 = sphi 0, %s87
      %s104 = sphi 0, %s88
      %s108 = sphi 0, %s108
      %s110 = sphi 0, %s108
      %s111 = sphi 0, %s110
      %s125 = sphi 0, %s111
      %s129 = sphi 0, %s129
      %s131 = sphi 0, %s129
      %s132 = sphi 0, %s131
      %s146 = sphi 0, %s132
      %s150 = sphi 0, %s150
      %s152 = sphi 0, %s150
      %s153 = sphi 0, %s152
      %s167 = sphi 0, %s153
      %s171 = sphi 0, %s171
      %s173 = sphi 0, %s171
      %s174 = sphi 0, %s173
      %s188 = sphi 0, %s174
      %s192 = sphi 0, %s192
      %s194 = sphi 0, %s192
      %s195 = sphi 0, %s194
      %s209 = sphi 0, %s195
      %s213 = sphi 0, %s213
      %s215 = sphi 0, %s213
      %s216 = sphi 0, %s215
      %s230 = sphi 0, %s216
      %s234 = sphi 0, %s234
      %s236 = sphi 0, %s234
      %s237 = sphi 0, %s236
      %s251 = sphi 0, %s237
      %s255 = sphi 0, %s255
      %s257 = sphi 0, %s255
      %s258 = sphi 0, %s257
      %s272 = sphi 0, %s258
      %s276 = sphi 0, %s276
      %s278 = sphi 0, %s276
      %s279 = sphi 0, %s278
      %s293 = sphi 0, %s279
      %s297 = sphi 0, %s297
      %s299 = sphi 0, %s297
      %s300 = sphi 0, %s299
      %s314 = sphi 0, %s300
      %s318 = sphi 0, %s318
      %s320 = sphi 0, %s318
      %s321 = sphi 0, %s320
      %s335 = sphi 0, %s321
      %s339 = sphi 0, %s339
      %s341 = sphi 0, %s339
      %s342 = sphi 0, %s341
      %s356 = sphi 0, %s342
      %s360 = sphi 0, %s360
      %s362 = sphi 0, %s360
      %s363 = sphi 0, %s362
      %s377 = sphi 0, %s363
      %s385 = sphi 0, %s387
      %s388 = sphi 0, %s385
      %s389 = sphi 0, %s388
      %s405 = sphi 0, %s389
      %s413 = sphi 0, %s415
      %s416 = sphi 0, %s413
      %s417 = sphi 0, %s416
      %s433 = sphi 0, %s417
    $region4: #{tpu_custom_call.1} parent=1 // loop_header_branch
      %35 = sbr.rel (%p33) target = $region8
    $region5: #{tpu_custom_call.1} parent=1 // loop_body
      %s37 = ssub.s32 %s32, 1
      %s38 = ssub.s32 %s32, 2
      %s45 = sadd.s32 1, %s40
      %p46 = scmp.ge.s32.totalorder %s45, 1
      %s47 = scalar_select %p46, 0, %s45
      %s48 = sadd.s32 1, %s39
      %s49 = scalar_select %p46, %s48, %s39
      %p50 = scmp.ge.s32.totalorder %s49, 2
      %s51 = scalar_select %p50, 0, %s49
      %s52 = ssub.s32 %s39, %s51
      %s53 = ssub.s32 %s40, %s47
      %s54 = sor.u32 %s52, %s53
      %p55 = scmp.eq.s32.totalorder %s54, 0
      %s57 = sadd.s32 %s56, 1
      %s58 = scalar_select %p55, %s56, %s57
      %p61 = pneg %p55
      %p62 = scmp.eq.s32.totalorder %s32, 1
      %p63 = por %p61, %p62
      %p64 = scmp.ne.s32.totalorder %s56, %s59
      %p65 = scmp.eq.s32.totalorder %s32, 0
      %p66 = por %p64, %p65
      %p67 = scmp.ne.s32.totalorder %s56, %s59
      %p68 = scmp.eq.s32.totalorder %s37, 1
      %p69 = por %p67, %p68
      %p70 = scmp.ne.s32.totalorder %s59, %s60
      %p71 = scmp.eq.s32.totalorder %s37, 0
      %p72 = por %p70, %p71
      %p73 = scmp.ne.s32.totalorder %s59, %s60
      %p74 = scmp.eq.s32.totalorder %s38, 1
      %p75 = por %p73, %p74
      %p77 = scmp.ne.s32.totalorder %s60, %s76
      %p78 = scmp.eq.s32.totalorder %s38, 0
      %p79 = por %p77, %p78
      %s80 = ssub.s32 %s39, %s51
      %s81 = ssub.s32 %s40, %s47
      %s82 = sor.u32 %s80, %s81
      %p83 = scmp.eq.s32.totalorder %s82, 0
      %s85 = sadd.s32 %s84, 1
      %s86 = scalar_select %p83, %s84, %s85
      %p89 = pneg %p83
      %p90 = scmp.eq.s32.totalorder %s32, 1
      %p91 = por %p89, %p90
      %p92 = scmp.ne.s32.totalorder %s84, %s87
      %p93 = scmp.eq.s32.totalorder %s32, 0
      %p94 = por %p92, %p93
      %p95 = scmp.ne.s32.totalorder %s84, %s87
      %p96 = scmp.eq.s32.totalorder %s37, 1
      %p97 = por %p95, %p96
      %p98 = scmp.ne.s32.totalorder %s87, %s88
      %p99 = scmp.eq.s32.totalorder %s37, 0
      %p100 = por %p98, %p99
      %p101 = scmp.ne.s32.totalorder %s87, %s88
      %p102 = scmp.eq.s32.totalorder %s38, 1
      %p103 = por %p101, %p102
      %p105 = scmp.ne.s32.totalorder %s88, %s104
      %p106 = scmp.eq.s32.totalorder %s38, 0
      %p107 = por %p105, %p106
      %s109 = sadd.s32 %s108, 1
      %p112 = scmp.eq.s32.totalorder %s32, 1
      %p113 = scmp.ne.s32.totalorder %s108, %s110
      %p114 = scmp.eq.s32.totalorder %s32, 0
      %p115 = por %p113, %p114
      %p116 = scmp.ne.s32.totalorder %s108, %s110
      %p117 = scmp.eq.s32.totalorder %s37, 1
      %p118 = por %p116, %p117
      %p119 = scmp.ne.s32.totalorder %s110, %s111
      %p120 = scmp.eq.s32.totalorder %s37, 0
      %p121 = por %p119, %p120
      %p122 = scmp.ne.s32.totalorder %s110, %s111
      %p123 = scmp.eq.s32.totalorder %s38, 1
      %p124 = por %p122, %p123
      %p126 = scmp.ne.s32.totalorder %s111, %s125
      %p127 = scmp.eq.s32.totalorder %s38, 0
      %p128 = por %p126, %p127
      %s130 = sadd.s32 %s129, 1
      %p133 = scmp.eq.s32.totalorder %s32, 1
      %p134 = scmp.ne.s32.totalorder %s129, %s131
      %p135 = scmp.eq.s32.totalorder %s32, 0
      %p136 = por %p134, %p135
      %p137 = scmp.ne.s32.totalorder %s129, %s131
      %p138 = scmp.eq.s32.totalorder %s37, 1
      %p139 = por %p137, %p138
      %p140 = scmp.ne.s32.totalorder %s131, %s132
      %p141 = scmp.eq.s32.totalorder %s37, 0
      %p142 = por %p140, %p141
      %p143 = scmp.ne.s32.totalorder %s131, %s132
      %p144 = scmp.eq.s32.totalorder %s38, 1
      %p145 = por %p143, %p144
      %p147 = scmp.ne.s32.totalorder %s132, %s146
      %p148 = scmp.eq.s32.totalorder %s38, 0
      %p149 = por %p147, %p148
      %s151 = sadd.s32 %s150, 1
      %p154 = scmp.eq.s32.totalorder %s32, 1
      %p155 = scmp.ne.s32.totalorder %s150, %s152
      %p156 = scmp.eq.s32.totalorder %s32, 0
      %p157 = por %p155, %p156
      %p158 = scmp.ne.s32.totalorder %s150, %s152
      %p159 = scmp.eq.s32.totalorder %s37, 1
      %p160 = por %p158, %p159
      %p161 = scmp.ne.s32.totalorder %s152, %s153
      %p162 = scmp.eq.s32.totalorder %s37, 0
      %p163 = por %p161, %p162
      %p164 = scmp.ne.s32.totalorder %s152, %s153
      %p165 = scmp.eq.s32.totalorder %s38, 1
      %p166 = por %p164, %p165
      %p168 = scmp.ne.s32.totalorder %s153, %s167
      %p169 = scmp.eq.s32.totalorder %s38, 0
      %p170 = por %p168, %p169
      %s172 = sadd.s32 %s171, 1
      %p175 = scmp.eq.s32.totalorder %s32, 1
      %p176 = scmp.ne.s32.totalorder %s171, %s173
      %p177 = scmp.eq.s32.totalorder %s32, 0
      %p178 = por %p176, %p177
      %p179 = scmp.ne.s32.totalorder %s171, %s173
      %p180 = scmp.eq.s32.totalorder %s37, 1
      %p181 = por %p179, %p180
      %p182 = scmp.ne.s32.totalorder %s173, %s174
      %p183 = scmp.eq.s32.totalorder %s37, 0
      %p184 = por %p182, %p183
      %p185 = scmp.ne.s32.totalorder %s173, %s174
      %p186 = scmp.eq.s32.totalorder %s38, 1
      %p187 = por %p185, %p186
      %p189 = scmp.ne.s32.totalorder %s174, %s188
      %p190 = scmp.eq.s32.totalorder %s38, 0
      %p191 = por %p189, %p190
      %s193 = sadd.s32 %s192, 1
      %p196 = scmp.eq.s32.totalorder %s32, 1
      %p197 = scmp.ne.s32.totalorder %s192, %s194
      %p198 = scmp.eq.s32.totalorder %s32, 0
      %p199 = por %p197, %p198
      %p200 = scmp.ne.s32.totalorder %s192, %s194
      %p201 = scmp.eq.s32.totalorder %s37, 1
      %p202 = por %p200, %p201
      %p203 = scmp.ne.s32.totalorder %s194, %s195
      %p204 = scmp.eq.s32.totalorder %s37, 0
      %p205 = por %p203, %p204
      %p206 = scmp.ne.s32.totalorder %s194, %s195
      %p207 = scmp.eq.s32.totalorder %s38, 1
      %p208 = por %p206, %p207
      %p210 = scmp.ne.s32.totalorder %s195, %s209
      %p211 = scmp.eq.s32.totalorder %s38, 0
      %p212 = por %p210, %p211
      %s214 = sadd.s32 %s213, 1
      %p217 = scmp.eq.s32.totalorder %s32, 1
      %p218 = scmp.ne.s32.totalorder %s213, %s215
      %p219 = scmp.eq.s32.totalorder %s32, 0
      %p220 = por %p218, %p219
      %p221 = scmp.ne.s32.totalorder %s213, %s215
      %p222 = scmp.eq.s32.totalorder %s37, 1
      %p223 = por %p221, %p222
      %p224 = scmp.ne.s32.totalorder %s215, %s216
      %p225 = scmp.eq.s32.totalorder %s37, 0
      %p226 = por %p224, %p225
      %p227 = scmp.ne.s32.totalorder %s215, %s216
      %p228 = scmp.eq.s32.totalorder %s38, 1
      %p229 = por %p227, %p228
      %p231 = scmp.ne.s32.totalorder %s216, %s230
      %p232 = scmp.eq.s32.totalorder %s38, 0
      %p233 = por %p231, %p232
      %s235 = sadd.s32 %s234, 1
      %p238 = scmp.eq.s32.totalorder %s32, 1
      %p239 = scmp.ne.s32.totalorder %s234, %s236
      %p240 = scmp.eq.s32.totalorder %s32, 0
      %p241 = por %p239, %p240
      %p242 = scmp.ne.s32.totalorder %s234, %s236
      %p243 = scmp.eq.s32.totalorder %s37, 1
      %p244 = por %p242, %p243
      %p245 = scmp.ne.s32.totalorder %s236, %s237
      %p246 = scmp.eq.s32.totalorder %s37, 0
      %p247 = por %p245, %p246
      %p248 = scmp.ne.s32.totalorder %s236, %s237
      %p249 = scmp.eq.s32.totalorder %s38, 1
      %p250 = por %p248, %p249
      %p252 = scmp.ne.s32.totalorder %s237, %s251
      %p253 = scmp.eq.s32.totalorder %s38, 0
      %p254 = por %p252, %p253
      %s256 = sadd.s32 %s255, 1
      %p259 = scmp.eq.s32.totalorder %s32, 1
      %p260 = scmp.ne.s32.totalorder %s255, %s257
      %p261 = scmp.eq.s32.totalorder %s32, 0
      %p262 = por %p260, %p261
      %p263 = scmp.ne.s32.totalorder %s255, %s257
      %p264 = scmp.eq.s32.totalorder %s37, 1
      %p265 = por %p263, %p264
      %p266 = scmp.ne.s32.totalorder %s257, %s258
      %p267 = scmp.eq.s32.totalorder %s37, 0
      %p268 = por %p266, %p267
      %p269 = scmp.ne.s32.totalorder %s257, %s258
      %p270 = scmp.eq.s32.totalorder %s38, 1
      %p271 = por %p269, %p270
      %p273 = scmp.ne.s32.totalorder %s258, %s272
      %p274 = scmp.eq.s32.totalorder %s38, 0
      %p275 = por %p273, %p274
      %s277 = sadd.s32 %s276, 1
      %p280 = scmp.eq.s32.totalorder %s32, 1
      %p281 = scmp.ne.s32.totalorder %s276, %s278
      %p282 = scmp.eq.s32.totalorder %s32, 0
      %p283 = por %p281, %p282
      %p284 = scmp.ne.s32.totalorder %s276, %s278
      %p285 = scmp.eq.s32.totalorder %s37, 1
      %p286 = por %p284, %p285
      %p287 = scmp.ne.s32.totalorder %s278, %s279
      %p288 = scmp.eq.s32.totalorder %s37, 0
      %p289 = por %p287, %p288
      %p290 = scmp.ne.s32.totalorder %s278, %s279
      %p291 = scmp.eq.s32.totalorder %s38, 1
      %p292 = por %p290, %p291
      %p294 = scmp.ne.s32.totalorder %s279, %s293
      %p295 = scmp.eq.s32.totalorder %s38, 0
      %p296 = por %p294, %p295
      %s298 = sadd.s32 %s297, 1
      %p301 = scmp.eq.s32.totalorder %s32, 1
      %p302 = scmp.ne.s32.totalorder %s297, %s299
      %p303 = scmp.eq.s32.totalorder %s32, 0
      %p304 = por %p302, %p303
      %p305 = scmp.ne.s32.totalorder %s297, %s299
      %p306 = scmp.eq.s32.totalorder %s37, 1
      %p307 = por %p305, %p306
      %p308 = scmp.ne.s32.totalorder %s299, %s300
      %p309 = scmp.eq.s32.totalorder %s37, 0
      %p310 = por %p308, %p309
      %p311 = scmp.ne.s32.totalorder %s299, %s300
      %p312 = scmp.eq.s32.totalorder %s38, 1
      %p313 = por %p311, %p312
      %p315 = scmp.ne.s32.totalorder %s300, %s314
      %p316 = scmp.eq.s32.totalorder %s38, 0
      %p317 = por %p315, %p316
      %s319 = sadd.s32 %s318, 1
      %p322 = scmp.eq.s32.totalorder %s32, 1
      %p323 = scmp.ne.s32.totalorder %s318, %s320
      %p324 = scmp.eq.s32.totalorder %s32, 0
      %p325 = por %p323, %p324
      %p326 = scmp.ne.s32.totalorder %s318, %s320
      %p327 = scmp.eq.s32.totalorder %s37, 1
      %p328 = por %p326, %p327
      %p329 = scmp.ne.s32.totalorder %s320, %s321
      %p330 = scmp.eq.s32.totalorder %s37, 0
      %p331 = por %p329, %p330
      %p332 = scmp.ne.s32.totalorder %s320, %s321
      %p333 = scmp.eq.s32.totalorder %s38, 1
      %p334 = por %p332, %p333
      %p336 = scmp.ne.s32.totalorder %s321, %s335
      %p337 = scmp.eq.s32.totalorder %s38, 0
      %p338 = por %p336, %p337
      %s340 = sadd.s32 %s339, 1
      %p343 = scmp.eq.s32.totalorder %s32, 1
      %p344 = scmp.ne.s32.totalorder %s339, %s341
      %p345 = scmp.eq.s32.totalorder %s32, 0
      %p346 = por %p344, %p345
      %p347 = scmp.ne.s32.totalorder %s339, %s341
      %p348 = scmp.eq.s32.totalorder %s37, 1
      %p349 = por %p347, %p348
      %p350 = scmp.ne.s32.totalorder %s341, %s342
      %p351 = scmp.eq.s32.totalorder %s37, 0
      %p352 = por %p350, %p351
      %p353 = scmp.ne.s32.totalorder %s341, %s342
      %p354 = scmp.eq.s32.totalorder %s38, 1
      %p355 = por %p353, %p354
      %p357 = scmp.ne.s32.totalorder %s342, %s356
      %p358 = scmp.eq.s32.totalorder %s38, 0
      %p359 = por %p357, %p358
      %s361 = sadd.s32 %s360, 1
      %p364 = scmp.eq.s32.totalorder %s32, 1
      %p365 = scmp.ne.s32.totalorder %s360, %s362
      %p366 = scmp.eq.s32.totalorder %s32, 0
      %p367 = por %p365, %p366
      %p368 = scmp.ne.s32.totalorder %s360, %s362
      %p369 = scmp.eq.s32.totalorder %s37, 1
      %p370 = por %p368, %p369
      %p371 = scmp.ne.s32.totalorder %s362, %s363
      %p372 = scmp.eq.s32.totalorder %s37, 0
      %p373 = por %p371, %p372
      %p374 = scmp.ne.s32.totalorder %s362, %s363
      %p375 = scmp.eq.s32.totalorder %s38, 1
      %p376 = por %p374, %p375
      %p378 = scmp.ne.s32.totalorder %s363, %s377
      %p379 = scmp.eq.s32.totalorder %s38, 0
      %p380 = por %p378, %p379
      %s381 = ssub.s32 %s39, %s51
      %s382 = ssub.s32 %s40, %s47
      %s383 = sor.u32 %s381, %s382
      %p384 = scmp.eq.s32.totalorder %s383, 0
      %s386 = sadd.s32 %s385, 1
      %s387 = scalar_select %p384, %s385, %s386
      %p390 = pneg %p384
      %p391 = scmp.eq.s32.totalorder %s32, 1
      %p392 = por %p390, %p391
      %p393 = scmp.ne.s32.totalorder %s385, %s388
      %p394 = scmp.eq.s32.totalorder %s32, 0
      %p395 = por %p393, %p394
      %p396 = scmp.ne.s32.totalorder %s385, %s388
      %p397 = scmp.eq.s32.totalorder %s37, 1
      %p398 = por %p396, %p397
      %p399 = scmp.ne.s32.totalorder %s388, %s389
      %p400 = scmp.eq.s32.totalorder %s37, 0
      %p401 = por %p399, %p400
      %p402 = scmp.ne.s32.totalorder %s388, %s389
      %p403 = scmp.eq.s32.totalorder %s38, 1
      %p404 = por %p402, %p403
      %p406 = scmp.ne.s32.totalorder %s389, %s405
      %p407 = scmp.eq.s32.totalorder %s38, 0
      %p408 = por %p406, %p407
      %s409 = ssub.s32 %s39, %s51
      %s410 = ssub.s32 %s40, %s47
      %s411 = sor.u32 %s409, %s410
      %p412 = scmp.eq.s32.totalorder %s411, 0
      %s414 = sadd.s32 %s413, 1
      %s415 = scalar_select %p412, %s413, %s414
      %p418 = pneg %p412
      %p419 = scmp.eq.s32.totalorder %s32, 1
      %p420 = por %p418, %p419
      %p421 = scmp.ne.s32.totalorder %s413, %s416
      %p422 = scmp.eq.s32.totalorder %s32, 0
      %p423 = por %p421, %p422
      %p424 = scmp.ne.s32.totalorder %s413, %s416
      %p425 = scmp.eq.s32.totalorder %s37, 1
      %p426 = por %p424, %p425
      %p427 = scmp.ne.s32.totalorder %s416, %s417
      %p428 = scmp.eq.s32.totalorder %s37, 0
      %p429 = por %p427, %p428
      %p430 = scmp.ne.s32.totalorder %s416, %s417
      %p431 = scmp.eq.s32.totalorder %s38, 1
      %p432 = por %p430, %p431
      %p434 = scmp.ne.s32.totalorder %s417, %s433
      %p435 = scmp.eq.s32.totalorder %s38, 0
      %p436 = por %p434, %p435
      %p437 = scmp.le.s32.totalorder 1, %s32
      %p438 = scmp.lt.s32.totalorder %s32, 3
      %p439 = pnand %p437, %p438
      %p440 = pneg %p439
      // Predicated region
      $region9: #{tpu_custom_call.1} parent=5 // pred_check
        _
      $region10: #{tpu_custom_call.1} parent=5 // pred_check_branch
        %442 = sbr.rel (%p439) target = $region12
      $region11: #{tpu_custom_call.1} parent=5 // pred_region
        %s443 = ssub.s32 %s32, 1
        // Predicated region
        $region13: #{tpu_custom_call.1} parent=11 // pred_check
          %p444 = pneg %p121
        $region14: #{tpu_custom_call.1} parent=11 // pred_check_branch
          %446 = sbr.rel (%p444) target = $region16
        $region15: #{tpu_custom_call.1} parent=11 // pred_region
          _
        $region16: #{tpu_custom_call.1} parent=11 // pred_fallthru
          _
        // Predicated region
        $region17: #{tpu_custom_call.1} parent=11 // pred_check
          %p447 = pneg %p142
        $region18: #{tpu_custom_call.1} parent=11 // pred_check_branch
          %449 = sbr.rel (%p447) target = $region20
        $region19: #{tpu_custom_call.1} parent=11 // pred_region
          %s451 = ssub.s32 16, 16
          %452 = vsyncadd [#allocation10], %s451
          %s454 = sshll.u32 [#allocation9], 4
          %s455 = int_to_ptr.vmem [resolvable:$true] %s454
          %457 = dma.hbm_to_vmem [thread:$0]  %s3, 16, %s455, [#allocation10]
        $region20: #{tpu_custom_call.1} parent=11 // pred_fallthru
          _
        // Predicated region
        $region21: #{tpu_custom_call.1} parent=11 // pred_check
          %p458 = pneg %p163
        $region22: #{tpu_custom_call.1} parent=11 // pred_check_branch
          %460 = sbr.rel (%p458) target = $region24
        $region23: #{tpu_custom_call.1} parent=11 // pred_region
          _
        $region24: #{tpu_custom_call.1} parent=11 // pred_fallthru
          _
        // Predicated region
        $region25: #{tpu_custom_call.1} parent=11 // pred_check
          %p461 = pneg %p184
        $region26: #{tpu_custom_call.1} parent=11 // pred_check_branch
          %463 = sbr.rel (%p461) target = $region28
        $region27: #{tpu_custom_call.1} parent=11 // pred_region
          _
        $region28: #{tpu_custom_call.1} parent=11 // pred_fallthru
          _
        // Predicated region
        $region29: #{tpu_custom_call.1} parent=11 // pred_check
          %p464 = pneg %p205
        $region30: #{tpu_custom_call.1} parent=11 // pred_check_branch
          %466 = sbr.rel (%p464) target = $region32
        $region31: #{tpu_custom_call.1} parent=11 // pred_region
          %s468 = ssub.s32 16, 16
          %469 = vsyncadd [#allocation13], %s468
          %s471 = sshll.u32 [#allocation12], 4
          %s472 = int_to_ptr.vmem [resolvable:$true] %s471
          %474 = dma.hbm_to_vmem [thread:$0]  %s6, 16, %s472, [#allocation13]
        $region32: #{tpu_custom_call.1} parent=11 // pred_fallthru
          _
        // Predicated region
        $region33: #{tpu_custom_call.1} parent=11 // pred_check
          %p475 = pneg %p226
        $region34: #{tpu_custom_call.1} parent=11 // pred_check_branch
          %477 = sbr.rel (%p475) target = $region36
        $region35: #{tpu_custom_call.1} parent=11 // pred_region
          _
        $region36: #{tpu_custom_call.1} parent=11 // pred_fallthru
          _
        // Predicated region
        $region37: #{tpu_custom_call.1} parent=11 // pred_check
          %p478 = pneg %p247
        $region38: #{tpu_custom_call.1} parent=11 // pred_check_branch
          %480 = sbr.rel (%p478) target = $region40
        $region39: #{tpu_custom_call.1} parent=11 // pred_region
          _
        $region40: #{tpu_custom_call.1} parent=11 // pred_fallthru
          _
        // Predicated region
        $region41: #{tpu_custom_call.1} parent=11 // pred_check
          %p481 = pneg %p268
        $region42: #{tpu_custom_call.1} parent=11 // pred_check_branch
          %483 = sbr.rel (%p481) target = $region44
        $region43: #{tpu_custom_call.1} parent=11 // pred_region
          %s485 = ssub.s32 16, 16
          %486 = vsyncadd [#allocation13], %s485
          %s488 = sshll.u32 [#allocation14], 4
          %s489 = int_to_ptr.vmem [resolvable:$true] %s488
          %491 = dma.hbm_to_vmem [thread:$0]  %s9, 16, %s489, [#allocation13]
        $region44: #{tpu_custom_call.1} parent=11 // pred_fallthru
          _
        // Predicated region
        $region45: #{tpu_custom_call.1} parent=11 // pred_check
          %p492 = pneg %p289
        $region46: #{tpu_custom_call.1} parent=11 // pred_check_branch
          %494 = sbr.rel (%p492) target = $region48
        $region47: #{tpu_custom_call.1} parent=11 // pred_region
          %s496 = ssub.s32 256, 256
          %497 = vsyncadd [#allocation16], %s496
          %s498 = sshll.u32 [#allocation15], 4
          %s499 = int_to_ptr.vmem [resolvable:$true] %s498
          %504 = dma.hbm_to_vmem [thread:$0]  %s10, 256, %s499, [#allocation16], 128, 128, 8
        $region48: #{tpu_custom_call.1} parent=11 // pred_fallthru
          _
        // Predicated region
        $region49: #{tpu_custom_call.1} parent=11 // pred_check
          %p505 = pneg %p310
        $region50: #{tpu_custom_call.1} parent=11 // pred_check_branch
          %507 = sbr.rel (%p505) target = $region52
        $region51: #{tpu_custom_call.1} parent=11 // pred_region
          %s509 = ssub.s32 16, 16
          %510 = vsyncadd [#allocation16], %s509
          %s512 = sshll.u32 [#allocation17], 4
          %s513 = int_to_ptr.vmem [resolvable:$true] %s512
          %515 = dma.hbm_to_vmem [thread:$0]  %s11, 16, %s513, [#allocation16]
        $region52: #{tpu_custom_call.1} parent=11 // pred_fallthru
          _
        // Predicated region
        $region53: #{tpu_custom_call.1} parent=11 // pred_check
          %p516 = pneg %p331
        $region54: #{tpu_custom_call.1} parent=11 // pred_check_branch
          %518 = sbr.rel (%p516) target = $region56
        $region55: #{tpu_custom_call.1} parent=11 // pred_region
          _
        $region56: #{tpu_custom_call.1} parent=11 // pred_fallthru
          _
        // Predicated region
        $region57: #{tpu_custom_call.1} parent=11 // pred_check
          %p519 = pneg %p352
        $region58: #{tpu_custom_call.1} parent=11 // pred_check_branch
          %521 = sbr.rel (%p519) target = $region60
        $region59: #{tpu_custom_call.1} parent=11 // pred_region
          _
        $region60: #{tpu_custom_call.1} parent=11 // pred_fallthru
          _
        // Predicated region
        $region61: #{tpu_custom_call.1} parent=11 // pred_check
          %p522 = pneg %p373
        $region62: #{tpu_custom_call.1} parent=11 // pred_check_branch
          %524 = sbr.rel (%p522) target = $region64
        $region63: #{tpu_custom_call.1} parent=11 // pred_region
          _
        $region64: #{tpu_custom_call.1} parent=11 // pred_fallthru
          _
      $region12: #{tpu_custom_call.1} parent=5 // pred_fallthru
        _
      %p525 = scmp.lt.s32.totalorder %s32, 2
      // Predicated region
      $region65: #{tpu_custom_call.1} parent=5 // pred_check
        %p526 = pneg %p525
      $region66: #{tpu_custom_call.1} parent=5 // pred_check_branch
        %528 = sbr.rel (%p526) target = $region68
      $region67: #{tpu_custom_call.1} parent=5 // pred_region
        // Predicated region
        $region69: #{tpu_custom_call.1} parent=67 // pred_check
          %p529 = pneg %p66
        $region70: #{tpu_custom_call.1} parent=67 // pred_check_branch
          %531 = sbr.rel (%p529) target = $region72
        $region71: #{tpu_custom_call.1} parent=67 // pred_region
          %p532 = scmp.lt.s32.totalorder %s39, 1
          %s533 = scalar_select %p532, %s39, 1
          %p534 = scmp.lt.s32.totalorder %s40, 0
          %s535 = scalar_select %p534, %s40, 0
          %s536 = sadd.s32 %s535, %s533
          %s537 = smul.addr %s536, 8
          %s538 = scalar_lea.vmem %s0, %s537
        $region72: #{tpu_custom_call.1} parent=67 // pred_fallthru
          _
        // Predicated region
        $region73: #{tpu_custom_call.1} parent=67 // pred_check
          %p539 = pneg %p94
        $region74: #{tpu_custom_call.1} parent=67 // pred_check_branch
          %541 = sbr.rel (%p539) target = $region76
        $region75: #{tpu_custom_call.1} parent=67 // pred_region
          %p542 = scmp.lt.s32.totalorder %s39, 1
          %s543 = scalar_select %p542, %s39, 1
          %p544 = scmp.lt.s32.totalorder %s40, 0
          %s545 = scalar_select %p544, %s40, 0
          %s546 = sadd.s32 %s545, %s543
          %s547 = smul.addr %s546, 8
          %s548 = scalar_lea.vmem %s1, %s547
        $region76: #{tpu_custom_call.1} parent=67 // pred_fallthru
          _
      $region68: #{tpu_custom_call.1} parent=5 // pred_fallthru
        _
      %p549 = scmp.le.s32.totalorder 1, %s32
      %p550 = scmp.lt.s32.totalorder %s32, 3
      %p551 = pnand %p549, %p550
      %p552 = pneg %p551
      // Predicated region
      $region77: #{tpu_custom_call.1} parent=5 // pred_check
        _
      $region78: #{tpu_custom_call.1} parent=5 // pred_check_branch
        %554 = sbr.rel (%p551) target = $region80
      $region79: #{tpu_custom_call.1} parent=5 // pred_region
        %s555 = ssub.s32 %s32, 1
        // Predicated region
        $region81: #{tpu_custom_call.1} parent=79 // pred_check
          %p556 = pneg %p142
        $region82: #{tpu_custom_call.1} parent=79 // pred_check_branch
          %558 = sbr.rel (%p556) target = $region84
        $region83: #{tpu_custom_call.1} parent=79 // pred_region
          %559 = dma.done [#allocation10], 16
        $region84: #{tpu_custom_call.1} parent=79 // pred_fallthru
          _
        // Predicated region
        $region85: #{tpu_custom_call.1} parent=79 // pred_check
          %p560 = pneg %p205
        $region86: #{tpu_custom_call.1} parent=79 // pred_check_branch
          %562 = sbr.rel (%p560) target = $region88
        $region87: #{tpu_custom_call.1} parent=79 // pred_region
          %563 = dma.done [#allocation13], 16
        $region88: #{tpu_custom_call.1} parent=79 // pred_fallthru
          _
        // Predicated region
        $region89: #{tpu_custom_call.1} parent=79 // pred_check
          %p564 = pneg %p268
        $region90: #{tpu_custom_call.1} parent=79 // pred_check_branch
          %566 = sbr.rel (%p564) target = $region92
        $region91: #{tpu_custom_call.1} parent=79 // pred_region
          %567 = dma.done [#allocation13], 16
        $region92: #{tpu_custom_call.1} parent=79 // pred_fallthru
          _
        // Predicated region
        $region93: #{tpu_custom_call.1} parent=79 // pred_check
          %p568 = pneg %p289
        $region94: #{tpu_custom_call.1} parent=79 // pred_check_branch
          %570 = sbr.rel (%p568) target = $region96
        $region95: #{tpu_custom_call.1} parent=79 // pred_region
          %571 = dma.done [#allocation16], 256
        $region96: #{tpu_custom_call.1} parent=79 // pred_fallthru
          _
        // Predicated region
        $region97: #{tpu_custom_call.1} parent=79 // pred_check
          %p572 = pneg %p310
        $region98: #{tpu_custom_call.1} parent=79 // pred_check_branch
          %574 = sbr.rel (%p572) target = $region100
        $region99: #{tpu_custom_call.1} parent=79 // pred_region
          %575 = dma.done [#allocation16], 16
        $region100: #{tpu_custom_call.1} parent=79 // pred_fallthru
          _
        %p576 = scmp.lt.s32.totalorder %s41, 1
        %s577 = scalar_select %p576, %s41, 1
        %p578 = scmp.lt.s32.totalorder %s42, 0
        %s579 = scalar_select %p578, %s42, 0
        %s580 = sadd.s32 %s579, %s577
        %s581 = smul.addr %s580, 8
        %s582 = scalar_lea.vmem %s0, %s581
        %p583 = pneg %p72
        %p584 = pneg %p69
        %p585 = scmp.lt.s32.totalorder %s41, 1
        %s586 = scalar_select %p585, %s41, 1
        %p587 = scmp.lt.s32.totalorder %s42, 0
        %s588 = scalar_select %p587, %s42, 0
        %s589 = sadd.s32 %s588, %s586
        %s590 = smul.addr %s589, 8
        %s591 = scalar_lea.vmem %s1, %s590
        %p592 = pneg %p100
        %p593 = pneg %p97
        %p594 = pneg %p121
        %p595 = pneg %p118
        %p596 = pneg %p142
        %p597 = pneg %p139
        %p598 = pneg %p163
        %p599 = pneg %p160
        %p600 = pneg %p184
        %p601 = pneg %p181
        %p602 = pneg %p205
        %p603 = pneg %p202
        %p604 = pneg %p226
        %p605 = pneg %p223
        %p606 = pneg %p247
        %p607 = pneg %p244
        %p608 = pneg %p268
        %p609 = pneg %p265
        %p610 = pneg %p289
        %p611 = pneg %p286
        %p612 = pneg %p310
        %p613 = pneg %p307
        %p614 = pneg %p331
        %p615 = pneg %p328
        %p616 = pneg %p352
        %p617 = pneg %p349
        %p618 = pneg %p373
        %p619 = pneg %p370
        %p620 = pneg %p401
        %p621 = pneg %p398
        %s622 = sand.u32 %s388, 1
        %s623 = scalar_lea.sflag [#allocation11], %s622
        %s624 = sand.u32 %s388, 1
        %s625 = smul.addr %s624, 8
        %s626 = scalar_lea.vmem [#allocation18], %s625
        %p627 = pneg %p429
        %p628 = pneg %p426
        %s629 = sand.u32 %s416, 1
        %s630 = scalar_lea.sflag [#allocation20], %s629
        %s631 = sand.u32 %s416, 1
        %s632 = smul.addr %s631, 8
        %s633 = scalar_lea.vmem [#allocation19], %s632
        %p634 = scmp.lt.s32.totalorder %s41, 1
        %s635 = scalar_select %p634, %s41, 1
        %p636 = scmp.lt.s32.totalorder %s42, 0
        %s637 = scalar_select %p636, %s42, 0
        %s638 = sadd.s32 %s637, %s635
        %s639 = smul.addr %s638, 8
        %s640 = scalar_lea.vmem %s0, %s639
        %p641 = scmp.lt.s32.totalorder %s41, 1
        %s642 = scalar_select %p641, %s41, 1
        %p643 = scmp.lt.s32.totalorder %s42, 0
        %s644 = scalar_select %p643, %s42, 0
        %s645 = sadd.s32 %s644, %s642
        %s646 = smul.addr %s645, 8
        %s647 = scalar_lea.vmem %s1, %s646
        %v649 = vld [vmem:[%s640] sm:$0xff]
        %v650 = vld [vmem:[%s647] sm:$0xff]
        %v651 = vadd.f32 %v649, %v650
        %vm652 = vcmask 261120
        %653 = vst.msk [vmem:[%s633] sm:$0xff] %vm652, %v651
        %v654 = vld [vmem:[%s2] sm:$0x1]
        %v655 = vld [vmem:[#allocation9] sm:$0x1]
        %v656 = vsel %vm652, %v651, 0.0
        %657 = vadd.xlane.f32.xlu0 %v656
        %v658 = vpop.xlane.xlu0 %657
        %v659 = vrcp.pop 32.0
        %v660 = vmul.f32 %v658, %v659
        %v661 = vsub.f32 %v651, %v660
        %v662 = vmul.f32 %v661, %v661
        %v663 = vsel %vm652, %v662, 0.0
        %664 = vadd.xlane.f32.xlu0 %v663
        %v665 = vpop.xlane.xlu0 %664
        %v666 = vmul.f32 %v665, %v659
        %v667 = vadd.f32 %v666, 1e-05
        %v668 = vrsqrt.pop %v667
        %v669 = vmul.f32 %v661, %v668
        %v671 = vlaneseq
        %v672 = vshrl.u32 %v671, 7
        %v673 = vsub.s32 0, %v672
        %v674 = vrot.slane %v654, %v673
        %v676 = vmul.f32 %v669, %v674
        %v678 = vlaneseq
        %v679 = vshrl.u32 %v678, 7
        %v680 = vsub.s32 0, %v679
        %v681 = vrot.slane %v655, %v680
        %v683 = vadd.f32 %v676, %v681
        %v684 = vpack.c.bf16 %v683, %v683
        %v685 = vld [vmem:[%s4] sm:$0xf]
        %v686 = vld [vmem:[%s4 + $0x4] sm:$0xf]
        %v687 = vld [vmem:[%s4 + $0x8] sm:$0xf]
        %v688 = vld [vmem:[%s4 + $0xc] sm:$0xf]
        %v693 = vunpack.c.l.b16 %v685
        %v694 = vunpack.c.l.b16 %v686
        %v695 = vunpack.c.l.b16 %v687
        %v696 = vunpack.c.l.b16 %v688
        %v697 = vpack.c.b16 %v694, %v693
        %v698 = vpack.c.b16 %v696, %v695
        %v702 = vsel %vm652, %v684, 0
        %704 = vmatprep.subr.bf16.mxu0 0
        %705 = vmatpush1.bf16.msra.mxu0 0
        %706 = vmatprep.subr.bf16.mxu0 0
        %707 = vmatpush1.bf16.msra.mxu0 0
        %708 = vmatprep.subr.bf16.mxu0 0
        %709 = vmatpush1.bf16.msra.mxu0 0
        %710 = vmatprep.subr.bf16.mxu0 0
        %711 = vmatpush1.bf16.msra.mxu0 0
        %712 = vmatprep.subr.bf16.mxu0 0
        %713 = vmatpush1.bf16.msra.mxu0 0
        %714 = vmatprep.subr.bf16.mxu0 0
        %715 = vmatpush1.bf16.msra.mxu0 0
        %716 = vmatprep.subr.bf16.mxu0 0
        %717 = vmatpush1.bf16.msra.mxu0 %v698
        %718 = vmatprep.subr.bf16.mxu0 0
        %719 = vmatpush1.bf16.msra.mxu0 %v697
        %720 = vmatprep.subr.bf16.mxu0 0
        %721 = vmatpush2.bf16.msra.mxu0 0
        %722 = vmatprep.subr.bf16.mxu0 0
        %723 = vmatpush2.bf16.msra.mxu0 0
        %724 = vmatprep.subr.bf16.mxu0 0
        %725 = vmatpush2.bf16.msra.mxu0 0
        %726 = vmatprep.subr.bf16.mxu0 0
        %727 = vmatpush2.bf16.msra.mxu0 0
        %728 = vmatprep.subr.bf16.mxu0 0
        %729 = vmatpush2.bf16.msra.mxu0 0
        %730 = vmatprep.subr.bf16.mxu0 0
        %731 = vmatpush2.bf16.msra.mxu0 0
        %732 = vmatprep.subr.bf16.mxu0 0
        %733 = vmatpush2.bf16.msra.mxu0 0
        %734 = vmatprep.subr.bf16.mxu0 0
        %735 = vmatpush2.bf16.msra.mxu0 0
        %736 = vmatprep.mubr.bf16.mxu0 0
        %737 = vmatmul.mubr.bf16.gmra.mxu0 %v702
        %v738 = vpop.f32.mrf.mxu0
        %v739 = vadd.f32 0.0, %v738
        %v740 = vpop.f32.mrf.mxu0
        %v741 = vpop.f32.mrf.mxu0
        %v742 = vpop.f32.mrf.mxu0
        %743 = vdwg.mxu0
        %p744 = scmp.eq.s32.totalorder %s42, 0
        // Predicated region
        $region101: #{tpu_custom_call.1} parent=79 // pred_check
          %p745 = pneg %p744
        $region102: #{tpu_custom_call.1} parent=79 // pred_check_branch
          %747 = sbr.rel (%p745) target = $region104
        $region103: #{tpu_custom_call.1} parent=79 // pred_region
          %vm748 = vcmask 523264
          %749 = vst.msk [vmem:[#allocation3] sm:$0xff] %vm748, 0.0
          %750 = vst.msk [vmem:[#allocation2] sm:$0xff] %vm748, 0.0
          %751 = vst.msk [vmem:[#allocation2 + $0x8] sm:$0xff] %vm748, 0.0
        $region104: #{tpu_custom_call.1} parent=79 // pred_fallthru
          _
        %v752 = vld [vmem:[#allocation3] sm:$0xff]
        %vm753 = vcmask 523264
        %754 = vst.msk [vmem:[#allocation4] sm:$0xff] %vm753, %v752
        %755 = vst.msk [vmem:[#allocation4 + $0x8] sm:$0xff] %vm753, %v739
        %v756 = vld [vmem:[#allocation4 + $0x8] sm:$0xff]
        %757 = vst.msk [vmem:[#allocation3] sm:$0xff] %vm753, %v756
        %v758 = vld [vmem:[#allocation12] sm:$0x1]
        %v760 = vlaneseq
        %v761 = vshrl.u32 %v760, 7
        %v762 = vsub.s32 0, %v761
        %v763 = vrot.slane %v758, %v762
        %v765 = vld [vmem:[%s5] sm:$0x1]
        %v766 = vld [vmem:[#allocation4 + $0x5] sm:$0xff]
        %v767 = vlaneseq
        %v768 = vshrl.u32 %v767, 7
        %v769 = vsub.s32 0, %v768
        %v770 = vrot.slane %v765, %v769
        %v771 = vmul.f32 %v770, %v766
        %v772 = vadd.f32 %v763, %v771
        %v773 = vld [vmem:[%s5 + $0x1] sm:$0x1]
        %v774 = vld [vmem:[#allocation4 + $0x6] sm:$0xff]
        %v775 = vlaneseq
        %v776 = vshrl.u32 %v775, 7
        %v777 = vsub.s32 0, %v776
        %v778 = vrot.slane %v773, %v777
        %v779 = vmul.f32 %v778, %v774
        %v780 = vadd.f32 %v772, %v779
        %v781 = vld [vmem:[%s5 + $0x2] sm:$0x1]
        %v782 = vld [vmem:[#allocation4 + $0x7] sm:$0xff]
        %v783 = vlaneseq
        %v784 = vshrl.u32 %v783, 7
        %v785 = vsub.s32 0, %v784
        %v786 = vrot.slane %v781, %v785
        %v787 = vmul.f32 %v786, %v782
        %v788 = vadd.f32 %v780, %v787
        %v789 = vld [vmem:[%s5 + $0x3] sm:$0x1]
        %v790 = vld [vmem:[#allocation4 + $0x8] sm:$0xff]
        %v791 = vlaneseq
        %v792 = vshrl.u32 %v791, 7
        %v793 = vsub.s32 0, %v792
        %v794 = vrot.slane %v789, %v793
        %v795 = vmul.f32 %v794, %v790
        %v796 = vadd.f32 %v788, %v795
        %v797 = vsub.f32 0.0, %v796
        %v798 = vmul.f32 %v797, 1.442695
        %v799 = vpow.pop %v798
        %v800 = vadd.f32 %v799, 1.0
        %v801 = vrcp.pop %v800
        %v802 = vmul.f32 1.0, %v801
        %v803 = vmul.f32 %v796, %v802
        %v804 = vpack.c.bf16 %v803, %v803
        %v805 = vld [vmem:[%s7] sm:$0xff]
        %v806 = vld [vmem:[%s7 + $0x8] sm:$0xff]
        %v807 = vld [vmem:[%s7 + $0x10] sm:$0xff]
        %v808 = vld [vmem:[%s7 + $0x18] sm:$0xff]
        %v809 = vld [vmem:[%s7 + $0x20] sm:$0xff]
        %v810 = vld [vmem:[%s7 + $0x28] sm:$0xff]
        %v811 = vld [vmem:[%s7 + $0x30] sm:$0xff]
        %v812 = vld [vmem:[%s7 + $0x38] sm:$0xff]
        %v821 = vunpack.c.l.b16 %v805
        %v822 = vunpack.c.h.b16 %v805
        %v823 = vunpack.c.l.b16 %v806
        %v824 = vunpack.c.h.b16 %v806
        %v825 = vunpack.c.l.b16 %v807
        %v826 = vunpack.c.h.b16 %v807
        %v827 = vunpack.c.l.b16 %v808
        %v828 = vunpack.c.h.b16 %v808
        %v829 = vunpack.c.l.b16 %v809
        %v830 = vunpack.c.h.b16 %v809
        %v831 = vunpack.c.l.b16 %v810
        %v832 = vunpack.c.h.b16 %v810
        %v833 = vunpack.c.l.b16 %v811
        %v834 = vunpack.c.h.b16 %v811
        %v835 = vunpack.c.l.b16 %v812
        %v836 = vunpack.c.h.b16 %v812
        %v837 = vpack.c.b16 %v823, %v821
        %v838 = vpack.c.b16 %v824, %v822
        %v839 = vpack.c.b16 %v827, %v825
        %v840 = vpack.c.b16 %v828, %v826
        %v841 = vpack.c.b16 %v831, %v829
        %v842 = vpack.c.b16 %v832, %v830
        %v843 = vpack.c.b16 %v835, %v833
        %v844 = vpack.c.b16 %v836, %v834
        %v854 = vsel %vm753, %v804, 0
        %856 = vmatprep.subr.bf16.mxu0 0
        %857 = vmatpush1.bf16.msra.mxu0 0
        %858 = vmatprep.subr.bf16.mxu0 0
        %859 = vmatpush1.bf16.msra.mxu0 0
        %860 = vmatprep.subr.bf16.mxu0 0
        %861 = vmatpush1.bf16.msra.mxu0 0
        %862 = vmatprep.subr.bf16.mxu0 0
        %863 = vmatpush1.bf16.msra.mxu0 0
        %864 = vmatprep.subr.bf16.mxu0 %v844
        %865 = vmatpush1.bf16.msra.mxu0 %v843
        %866 = vmatprep.subr.bf16.mxu0 %v842
        %867 = vmatpush1.bf16.msra.mxu0 %v841
        %868 = vmatprep.subr.bf16.mxu0 %v840
        %869 = vmatpush1.bf16.msra.mxu0 %v839
        %870 = vmatprep.subr.bf16.mxu0 %v838
        %871 = vmatpush1.bf16.msra.mxu0 %v837
        %872 = vmatprep.subr.bf16.mxu0 0
        %873 = vmatpush2.bf16.msra.mxu0 0
        %874 = vmatprep.subr.bf16.mxu0 0
        %875 = vmatpush2.bf16.msra.mxu0 0
        %876 = vmatprep.subr.bf16.mxu0 0
        %877 = vmatpush2.bf16.msra.mxu0 0
        %878 = vmatprep.subr.bf16.mxu0 0
        %879 = vmatpush2.bf16.msra.mxu0 0
        %880 = vmatprep.subr.bf16.mxu0 0
        %881 = vmatpush2.bf16.msra.mxu0 0
        %882 = vmatprep.subr.bf16.mxu0 0
        %883 = vmatpush2.bf16.msra.mxu0 0
        %884 = vmatprep.subr.bf16.mxu0 0
        %885 = vmatpush2.bf16.msra.mxu0 0
        %886 = vmatprep.subr.bf16.mxu0 0
        %887 = vmatpush2.bf16.msra.mxu0 0
        %888 = vmatprep.mubr.bf16.mxu0 0
        %889 = vmatmul.mubr.bf16.gmra.mxu0 %v854
        %v890 = vpop.f32.mrf.mxu0
        %v891 = vadd.f32 0.0, %v890
        %v892 = vpop.f32.mrf.mxu0
        %v893 = vadd.f32 0.0, %v892
        %v894 = vpop.f32.mrf.mxu0
        %v895 = vpop.f32.mrf.mxu0
        %896 = vdwg.mxu0
        %v897 = vpack.c.bf16 %v891, %v891
        %v898 = vld [vmem:[%s8] sm:$0xf]
        %v899 = vld [vmem:[%s8 + $0x4] sm:$0xf]
        %v900 = vld [vmem:[%s8 + $0x8] sm:$0xf]
        %v901 = vld [vmem:[%s8 + $0xc] sm:$0xf]
        %v902 = vld [vmem:[%s8 + $0x10] sm:$0xf]
        %v903 = vld [vmem:[%s8 + $0x14] sm:$0xf]
        %v904 = vld [vmem:[%s8 + $0x18] sm:$0xf]
        %v905 = vld [vmem:[%s8 + $0x1c] sm:$0xf]
        %v906 = vld [vmem:[%s8 + $0x20] sm:$0xf]
        %v907 = vld [vmem:[%s8 + $0x24] sm:$0xf]
        %v908 = vld [vmem:[%s8 + $0x28] sm:$0xf]
        %v909 = vld [vmem:[%s8 + $0x2c] sm:$0xf]
        %v910 = vld [vmem:[%s8 + $0x30] sm:$0xf]
        %v911 = vld [vmem:[%s8 + $0x34] sm:$0xf]
        %v912 = vld [vmem:[%s8 + $0x38] sm:$0xf]
        %v913 = vld [vmem:[%s8 + $0x3c] sm:$0xf]
        %v914 = vld [vmem:[#allocation14] sm:$0x1]
        %v916 = vlaneseq
        %v917 = vshrl.u32 %v916, 7
        %v918 = vsub.s32 0, %v917
        %v919 = vrot.slane %v914, %v918
        %v937 = vunpack.c.l.b16 %v898
        %v938 = vunpack.c.l.b16 %v899
        %v939 = vunpack.c.l.b16 %v900
        %v940 = vunpack.c.l.b16 %v901
        %v941 = vunpack.c.l.b16 %v902
        %v942 = vunpack.c.l.b16 %v903
        %v943 = vunpack.c.l.b16 %v904
        %v944 = vunpack.c.l.b16 %v905
        %v945 = vunpack.c.l.b16 %v906
        %v946 = vunpack.c.l.b16 %v907
        %v947 = vunpack.c.l.b16 %v908
        %v948 = vunpack.c.l.b16 %v909
        %v949 = vunpack.c.l.b16 %v910
        %v950 = vunpack.c.l.b16 %v911
        %v951 = vunpack.c.l.b16 %v912
        %v952 = vunpack.c.l.b16 %v913
        %v953 = vpack.c.b16 %v938, %v937
        %v954 = vpack.c.b16 %v940, %v939
        %v955 = vpack.c.b16 %v942, %v941
        %v956 = vpack.c.b16 %v944, %v943
        %v957 = vpack.c.b16 %v946, %v945
        %v958 = vpack.c.b16 %v948, %v947
        %v959 = vpack.c.b16 %v950, %v949
        %v960 = vpack.c.b16 %v952, %v951
        %969 = vmatprep.subr.bf16.mxu0 0
        %970 = vmatpush1.bf16.msra.mxu0 %v960
        %971 = vmatprep.subr.bf16.mxu0 0
        %972 = vmatpush1.bf16.msra.mxu0 %v959
        %973 = vmatprep.subr.bf16.mxu0 0
        %974 = vmatpush1.bf16.msra.mxu0 %v958
        %975 = vmatprep.subr.bf16.mxu0 0
        %976 = vmatpush1.bf16.msra.mxu0 %v957
        %977 = vmatprep.subr.bf16.mxu0 0
        %978 = vmatpush1.bf16.msra.mxu0 %v956
        %979 = vmatprep.subr.bf16.mxu0 0
        %980 = vmatpush1.bf16.msra.mxu0 %v955
        %981 = vmatprep.subr.bf16.mxu0 0
        %982 = vmatpush1.bf16.msra.mxu0 %v954
        %983 = vmatprep.subr.bf16.mxu0 0
        %984 = vmatpush1.bf16.msra.mxu0 %v953
        %985 = vmatprep.subr.bf16.mxu0 0
        %986 = vmatpush2.bf16.msra.mxu0 0
        %987 = vmatprep.subr.bf16.mxu0 0
        %988 = vmatpush2.bf16.msra.mxu0 0
        %989 = vmatprep.subr.bf16.mxu0 0
        %990 = vmatpush2.bf16.msra.mxu0 0
        %991 = vmatprep.subr.bf16.mxu0 0
        %992 = vmatpush2.bf16.msra.mxu0 0
        %993 = vmatprep.subr.bf16.mxu0 0
        %994 = vmatpush2.bf16.msra.mxu0 0
        %995 = vmatprep.subr.bf16.mxu0 0
        %996 = vmatpush2.bf16.msra.mxu0 0
        %997 = vmatprep.subr.bf16.mxu0 0
        %998 = vmatpush2.bf16.msra.mxu0 0
        %999 = vmatprep.subr.bf16.mxu0 0
        %1000 = vmatpush2.bf16.msra.mxu0 0
        %1001 = vmatprep.mubr.bf16.mxu0 0
        %1002 = vmatmul.mubr.bf16.gmra.mxu0 %v897
        %v1003 = vpop.f32.mrf.mxu0
        %v1004 = vadd.f32 %v919, %v1003
        %v1005 = vpop.f32.mrf.mxu0
        %v1006 = vpop.f32.mrf.mxu0
        %v1007 = vpop.f32.mrf.mxu0
        %1008 = vdwg.mxu0
        %vm1009 = vcmp.gt.f32.partialorder %v1004, 20.0
        %v1010 = vmin.f32 %v1004, 20.0
        %v1011 = vmul.f32 %v1010, 1.442695
        %v1012 = vpow.pop %v1011
        %v1013 = vadd.f32 %v1012, 1.0
        %v1014 = vlog2.pop %v1013
        %v1015 = vmul.f32 %v1014, 0.6931472
        %v1016 = vmul.f32 -0.5, %v1012
        %v1017 = vadd.f32 %v1016, 1.0
        %v1018 = vmul.f32 %v1017, %v1012
        %v1019 = vand.u32 2147483647, %v1012
        %vm1020 = vcmp.lt.f32.partialorder %v1019, 0.0004427343
        %v1021 = vsel %vm1020, %v1018, %v1015
        %v1022 = vsel %vm1009, %v1004, %v1021
        %v1023 = vld [vmem:[#allocation15] sm:$0xff]
        %v1024 = vld [vmem:[#allocation15 + $0x8] sm:$0xff]
        %v1025 = vmul.f32 %v1023, 1.442695
        %v1026 = vpow.pop %v1025
        %v1027 = vmul.f32 %v1024, 1.442695
        %v1028 = vpow.pop %v1027
        %v1029 = vsub.f32 0.0, %v1026
        %v1030 = vsub.f32 0.0, %v1028
        %1031 = vst.msk [vmem:[#allocation5] sm:$0xff] %vm753, %v1022
        %v1032 = vmul.f32 %v1022, %v803
        %1033 = vst.msk [vmem:[#allocation6] sm:$0xff] %vm753, %v1032
        %1034 = vst.msk [vmem:[#allocation7] sm:$0xff] %vm652, %v893
        %v1035 = vld [vmem:[#allocation2] sm:$0xff]
        %v1036 = vld [vmem:[#allocation2 + $0x8] sm:$0xff]
        %v1037 = vld [vmem:[#allocation5] sm:$0xff]
        %v1038 = vld [vmem:[#allocation6] sm:$0xff]
        %v1039 = vld [vmem:[#allocation7] sm:$0xff]
        %1040 = vxpose.xlu0.b32.start [1/16] %v1039, 128
        %1041 = vxpose.xlu0.b32.cont [2/16] 0.0, 128
        %1042 = vxpose.xlu0.b32.cont [3/16] 0.0, 128
        %1043 = vxpose.xlu0.b32.cont [4/16] 0.0, 128
        %1044 = vxpose.xlu0.b32.cont [5/16] 0.0, 128
        %1045 = vxpose.xlu0.b32.cont [6/16] 0.0, 128
        %1046 = vxpose.xlu0.b32.cont [7/16] 0.0, 128
        %1047 = vxpose.xlu0.b32.cont [8/16] 0.0, 128
        %1048 = vxpose.xlu0.b32.cont [9/16] 0.0, 128
        %1049 = vxpose.xlu0.b32.cont [10/16] 0.0, 128
        %1050 = vxpose.xlu0.b32.cont [11/16] 0.0, 128
        %1051 = vxpose.xlu0.b32.cont [12/16] 0.0, 128
        %1052 = vxpose.xlu0.b32.cont [13/16] 0.0, 128
        %1053 = vxpose.xlu0.b32.cont [14/16] 0.0, 128
        %1054 = vxpose.xlu0.b32.cont [15/16] 0.0, 128
        %1055 = vxpose.xlu0.b32.end [16/16] 0.0, 128
        %v1056 = vpop.trf.xlu0
        %v1057 = vpop.trf.xlu0
        %v1058 = vpop.trf.xlu0
        %v1059 = vpop.trf.xlu0
        %v1060 = vpop.trf.xlu0
        %v1061 = vpop.trf.xlu0
        %v1062 = vpop.trf.xlu0
        %v1063 = vpop.trf.xlu0
        %v1064 = vpop.trf.xlu0
        %v1065 = vpop.trf.xlu0
        %v1066 = vpop.trf.xlu0
        %v1067 = vpop.trf.xlu0
        %v1068 = vpop.trf.xlu0
        %v1069 = vpop.trf.xlu0
        %v1070 = vpop.trf.xlu0
        %v1071 = vpop.trf.xlu0
        %v1072 = vlaneseq
        %v1073 = vshrl.u32 %v1072, 7
        %v1074 = vsub.s32 0, %v1073
        %v1075 = vrot.slane %v1037, %v1074
        %v1076 = vmul.f32 %v1075, %v1029
        %v1077 = vmul.f32 %v1075, %v1030
        %v1078 = vmul.f32 %v1076, 1.442695
        %v1079 = vpow.pop %v1078
        %v1080 = vmul.f32 %v1077, 1.442695
        %v1081 = vpow.pop %v1080
        %v1082 = vmul.f32 %v1079, %v1035
        %v1083 = vmul.f32 %v1081, %v1036
        %v1084 = vlaneseq
        %v1085 = vshrl.u32 %v1084, 7
        %v1086 = vsub.s32 0, %v1085
        %v1087 = vrot.slane %v1038, %v1086
        %1089 = vset.pattern.permute.xlu0 0
        %1090 = vperm.xlu0 %1089, %v1056
        %v1091 = vpop.permute.xlu0 %1090
        %1094 = vset.pattern.permute.xlu0 0
        %1095 = vperm.xlu0 %1094, %v1057
        %v1096 = vpop.permute.xlu0 %1095
        %v1098 = vmul.f32 %v1087, %v1091
        %v1099 = vmul.f32 %v1087, %v1096
        %v1100 = vadd.f32 %v1082, %v1098
        %v1101 = vadd.f32 %v1083, %v1099
        %1103 = vset.pattern.permute.xlu0 0
        %1104 = vperm.xlu0 %1103, %v1058
        %v1105 = vpop.permute.xlu0 %1104
        %1108 = vset.pattern.permute.xlu0 0
        %1109 = vperm.xlu0 %1108, %v1059
        %v1110 = vpop.permute.xlu0 %1109
        %v1112 = vmul.f32 %v1105, %v1100
        %v1113 = vmul.f32 %v1110, %v1101
        %v1114 = vsel %vm753, %v1112, 0.0
        %v1115 = vsel %vm753, %v1113, 0.0
        %v1116 = vadd.f32 %v1114, %v1115
        %v1117 = vrot.slane %v1116, 4
        %v1118 = vadd.f32 %v1116, %v1117
        %v1119 = vrot.slane %v1118, 2
        %v1120 = vadd.f32 %v1118, %v1119
        %v1121 = vrot.slane %v1120, 1
        %v1122 = vadd.f32 %v1120, %v1121
        %v1123 = vlaneseq
        %v1124 = vshrl.u32 %v1123, 7
        %v1125 = vsub.s32 1, %v1124
        %v1126 = vrot.slane %v1037, %v1125
        %v1127 = vmul.f32 %v1126, %v1029
        %v1128 = vmul.f32 %v1126, %v1030
        %v1129 = vmul.f32 %v1127, 1.442695
        %v1130 = vpow.pop %v1129
        %v1131 = vmul.f32 %v1128, 1.442695
        %v1132 = vpow.pop %v1131
        %v1133 = vmul.f32 %v1130, %v1100
        %v1134 = vmul.f32 %v1132, %v1101
        %v1135 = vlaneseq
        %v1136 = vshrl.u32 %v1135, 7
        %v1137 = vsub.s32 1, %v1136
        %v1138 = vrot.slane %v1038, %v1137
        %1139 = vset.pattern.permute.xlu0 1
        %1140 = vperm.xlu0 %1139, %v1056
        %v1141 = vpop.permute.xlu0 %1140
        %1143 = vset.pattern.permute.xlu0 1
        %1144 = vperm.xlu0 %1143, %v1057
        %v1145 = vpop.permute.xlu0 %1144
        %v1147 = vmul.f32 %v1138, %v1141
        %v1148 = vmul.f32 %v1138, %v1145
        %v1149 = vadd.f32 %v1133, %v1147
        %v1150 = vadd.f32 %v1134, %v1148
        %1151 = vset.pattern.permute.xlu0 1
        %1152 = vperm.xlu0 %1151, %v1058
        %v1153 = vpop.permute.xlu0 %1152
        %1155 = vset.pattern.permute.xlu0 1
        %1156 = vperm.xlu0 %1155, %v1059
        %v1157 = vpop.permute.xlu0 %1156
        %v1159 = vmul.f32 %v1153, %v1149
        %v1160 = vmul.f32 %v1157, %v1150
        %v1161 = vsel %vm753, %v1159, 0.0
        %v1162 = vsel %vm753, %v1160, 0.0
        %v1163 = vadd.f32 %v1161, %v1162
        %v1164 = vrot.slane %v1163, 4
        %v1165 = vadd.f32 %v1163, %v1164
        %v1166 = vrot.slane %v1165, 2
        %v1167 = vadd.f32 %v1165, %v1166
        %v1168 = vrot.slane %v1167, 1
        %v1169 = vadd.f32 %v1167, %v1168
        %v1170 = vlaneseq
        %v1171 = vshrl.u32 %v1170, 7
        %v1172 = vsub.s32 2, %v1171
        %v1173 = vrot.slane %v1037, %v1172
        %v1174 = vmul.f32 %v1173, %v1029
        %v1175 = vmul.f32 %v1173, %v1030
        %v1176 = vmul.f32 %v1174, 1.442695
        %v1177 = vpow.pop %v1176
        %v1178 = vmul.f32 %v1175, 1.442695
        %v1179 = vpow.pop %v1178
        %v1180 = vmul.f32 %v1177, %v1149
        %v1181 = vmul.f32 %v1179, %v1150
        %v1182 = vlaneseq
        %v1183 = vshrl.u32 %v1182, 7
        %v1184 = vsub.s32 2, %v1183
        %v1185 = vrot.slane %v1038, %v1184
        %1186 = vset.pattern.permute.xlu0 2
        %1187 = vperm.xlu0 %1186, %v1056
        %v1188 = vpop.permute.xlu0 %1187
        %1190 = vset.pattern.permute.xlu0 2
        %1191 = vperm.xlu0 %1190, %v1057
        %v1192 = vpop.permute.xlu0 %1191
        %v1194 = vmul.f32 %v1185, %v1188
        %v1195 = vmul.f32 %v1185, %v1192
        %v1196 = vadd.f32 %v1180, %v1194
        %v1197 = vadd.f32 %v1181, %v1195
        %1198 = vset.pattern.permute.xlu0 2
        %1199 = vperm.xlu0 %1198, %v1058
        %v1200 = vpop.permute.xlu0 %1199
        %1202 = vset.pattern.permute.xlu0 2
        %1203 = vperm.xlu0 %1202, %v1059
        %v1204 = vpop.permute.xlu0 %1203
        %v1206 = vmul.f32 %v1200, %v1196
        %v1207 = vmul.f32 %v1204, %v1197
        %v1208 = vsel %vm753, %v1206, 0.0
        %v1209 = vsel %vm753, %v1207, 0.0
        %v1210 = vadd.f32 %v1208, %v1209
        %v1211 = vrot.slane %v1210, 4
        %v1212 = vadd.f32 %v1210, %v1211
        %v1213 = vrot.slane %v1212, 2
        %v1214 = vadd.f32 %v1212, %v1213
        %v1215 = vrot.slane %v1214, 1
        %v1216 = vadd.f32 %v1214, %v1215
        %v1217 = vlaneseq
        %v1218 = vshrl.u32 %v1217, 7
        %v1219 = vsub.s32 3, %v1218
        %v1220 = vrot.slane %v1037, %v1219
        %v1221 = vmul.f32 %v1220, %v1029
        %v1222 = vmul.f32 %v1220, %v1030
        %v1223 = vmul.f32 %v1221, 1.442695
        %v1224 = vpow.pop %v1223
        %v1225 = vmul.f32 %v1222, 1.442695
        %v1226 = vpow.pop %v1225
        %v1227 = vmul.f32 %v1224, %v1196
        %v1228 = vmul.f32 %v1226, %v1197
        %v1229 = vlaneseq
        %v1230 = vshrl.u32 %v1229, 7
        %v1231 = vsub.s32 3, %v1230
        %v1232 = vrot.slane %v1038, %v1231
        %1233 = vset.pattern.permute.xlu0 3
        %1234 = vperm.xlu0 %1233, %v1056
        %v1235 = vpop.permute.xlu0 %1234
        %1237 = vset.pattern.permute.xlu0 3
        %1238 = vperm.xlu0 %1237, %v1057
        %v1239 = vpop.permute.xlu0 %1238
        %v1241 = vmul.f32 %v1232, %v1235
        %v1242 = vmul.f32 %v1232, %v1239
        %v1243 = vadd.f32 %v1227, %v1241
        %v1244 = vadd.f32 %v1228, %v1242
        %1245 = vset.pattern.permute.xlu0 3
        %1246 = vperm.xlu0 %1245, %v1058
        %v1247 = vpop.permute.xlu0 %1246
        %1249 = vset.pattern.permute.xlu0 3
        %1250 = vperm.xlu0 %1249, %v1059
        %v1251 = vpop.permute.xlu0 %1250
        %v1253 = vmul.f32 %v1247, %v1243
        %v1254 = vmul.f32 %v1251, %v1244
        %v1255 = vsel %vm753, %v1253, 0.0
        %v1256 = vsel %vm753, %v1254, 0.0
        %v1257 = vadd.f32 %v1255, %v1256
        %v1258 = vrot.slane %v1257, 4
        %v1259 = vadd.f32 %v1257, %v1258
        %v1260 = vrot.slane %v1259, 2
        %v1261 = vadd.f32 %v1259, %v1260
        %v1262 = vrot.slane %v1261, 1
        %v1263 = vadd.f32 %v1261, %v1262
        %v1264 = vlaneseq
        %v1265 = vshrl.u32 %v1264, 7
        %v1266 = vsub.s32 4, %v1265
        %v1267 = vrot.slane %v1037, %v1266
        %v1268 = vmul.f32 %v1267, %v1029
        %v1269 = vmul.f32 %v1267, %v1030
        %v1270 = vmul.f32 %v1268, 1.442695
        %v1271 = vpow.pop %v1270
        %v1272 = vmul.f32 %v1269, 1.442695
        %v1273 = vpow.pop %v1272
        %v1274 = vmul.f32 %v1271, %v1243
        %v1275 = vmul.f32 %v1273, %v1244
        %v1276 = vlaneseq
        %v1277 = vshrl.u32 %v1276, 7
        %v1278 = vsub.s32 4, %v1277
        %v1279 = vrot.slane %v1038, %v1278
        %1280 = vset.pattern.permute.xlu0 4
        %1281 = vperm.xlu0 %1280, %v1056
        %v1282 = vpop.permute.xlu0 %1281
        %1284 = vset.pattern.permute.xlu0 4
        %1285 = vperm.xlu0 %1284, %v1057
        %v1286 = vpop.permute.xlu0 %1285
        %v1288 = vmul.f32 %v1279, %v1282
        %v1289 = vmul.f32 %v1279, %v1286
        %v1290 = vadd.f32 %v1274, %v1288
        %v1291 = vadd.f32 %v1275, %v1289
        %1292 = vset.pattern.permute.xlu0 4
        %1293 = vperm.xlu0 %1292, %v1058
        %v1294 = vpop.permute.xlu0 %1293
        %1296 = vset.pattern.permute.xlu0 4
        %1297 = vperm.xlu0 %1296, %v1059
        %v1298 = vpop.permute.xlu0 %1297
        %v1300 = vmul.f32 %v1294, %v1290
        %v1301 = vmul.f32 %v1298, %v1291
        %v1302 = vsel %vm753, %v1300, 0.0
        %v1303 = vsel %vm753, %v1301, 0.0
        %v1304 = vadd.f32 %v1302, %v1303
        %v1305 = vrot.slane %v1304, 4
        %v1306 = vadd.f32 %v1304, %v1305
        %v1307 = vrot.slane %v1306, 2
        %v1308 = vadd.f32 %v1306, %v1307
        %v1309 = vrot.slane %v1308, 1
        %v1310 = vadd.f32 %v1308, %v1309
        %v1311 = vlaneseq
        %v1312 = vshrl.u32 %v1311, 7
        %v1313 = vsub.s32 5, %v1312
        %v1314 = vrot.slane %v1037, %v1313
        %v1315 = vmul.f32 %v1314, %v1029
        %v1316 = vmul.f32 %v1314, %v1030
        %v1317 = vmul.f32 %v1315, 1.442695
        %v1318 = vpow.pop %v1317
        %v1319 = vmul.f32 %v1316, 1.442695
        %v1320 = vpow.pop %v1319
        %v1321 = vmul.f32 %v1318, %v1290
        %v1322 = vmul.f32 %v1320, %v1291
        %v1323 = vlaneseq
        %v1324 = vshrl.u32 %v1323, 7
        %v1325 = vsub.s32 5, %v1324
        %v1326 = vrot.slane %v1038, %v1325
        %1327 = vset.pattern.permute.xlu0 5
        %1328 = vperm.xlu0 %1327, %v1056
        %v1329 = vpop.permute.xlu0 %1328
        %1331 = vset.pattern.permute.xlu0 5
        %1332 = vperm.xlu0 %1331, %v1057
        %v1333 = vpop.permute.xlu0 %1332
        %v1335 = vmul.f32 %v1326, %v1329
        %v1336 = vmul.f32 %v1326, %v1333
        %v1337 = vadd.f32 %v1321, %v1335
        %v1338 = vadd.f32 %v1322, %v1336
        %1339 = vset.pattern.permute.xlu0 5
        %1340 = vperm.xlu0 %1339, %v1058
        %v1341 = vpop.permute.xlu0 %1340
        %1343 = vset.pattern.permute.xlu0 5
        %1344 = vperm.xlu0 %1343, %v1059
        %v1345 = vpop.permute.xlu0 %1344
        %v1347 = vmul.f32 %v1341, %v1337
        %v1348 = vmul.f32 %v1345, %v1338
        %v1349 = vsel %vm753, %v1347, 0.0
        %v1350 = vsel %vm753, %v1348, 0.0
        %v1351 = vadd.f32 %v1349, %v1350
        %v1352 = vrot.slane %v1351, 4
        %v1353 = vadd.f32 %v1351, %v1352
        %v1354 = vrot.slane %v1353, 2
        %v1355 = vadd.f32 %v1353, %v1354
        %v1356 = vrot.slane %v1355, 1
        %v1357 = vadd.f32 %v1355, %v1356
        %v1358 = vlaneseq
        %v1359 = vshrl.u32 %v1358, 7
        %v1360 = vsub.s32 6, %v1359
        %v1361 = vrot.slane %v1037, %v1360
        %v1362 = vmul.f32 %v1361, %v1029
        %v1363 = vmul.f32 %v1361, %v1030
        %v1364 = vmul.f32 %v1362, 1.442695
        %v1365 = vpow.pop %v1364
        %v1366 = vmul.f32 %v1363, 1.442695
        %v1367 = vpow.pop %v1366
        %v1368 = vmul.f32 %v1365, %v1337
        %v1369 = vmul.f32 %v1367, %v1338
        %v1370 = vlaneseq
        %v1371 = vshrl.u32 %v1370, 7
        %v1372 = vsub.s32 6, %v1371
        %v1373 = vrot.slane %v1038, %v1372
        %1374 = vset.pattern.permute.xlu0 6
        %1375 = vperm.xlu0 %1374, %v1056
        %v1376 = vpop.permute.xlu0 %1375
        %1378 = vset.pattern.permute.xlu0 6
        %1379 = vperm.xlu0 %1378, %v1057
        %v1380 = vpop.permute.xlu0 %1379
        %v1382 = vmul.f32 %v1373, %v1376
        %v1383 = vmul.f32 %v1373, %v1380
        %v1384 = vadd.f32 %v1368, %v1382
        %v1385 = vadd.f32 %v1369, %v1383
        %1386 = vset.pattern.permute.xlu0 6
        %1387 = vperm.xlu0 %1386, %v1058
        %v1388 = vpop.permute.xlu0 %1387
        %1390 = vset.pattern.permute.xlu0 6
        %1391 = vperm.xlu0 %1390, %v1059
        %v1392 = vpop.permute.xlu0 %1391
        %v1394 = vmul.f32 %v1388, %v1384
        %v1395 = vmul.f32 %v1392, %v1385
        %v1396 = vsel %vm753, %v1394, 0.0
        %v1397 = vsel %vm753, %v1395, 0.0
        %v1398 = vadd.f32 %v1396, %v1397
        %v1399 = vrot.slane %v1398, 4
        %v1400 = vadd.f32 %v1398, %v1399
        %v1401 = vrot.slane %v1400, 2
        %v1402 = vadd.f32 %v1400, %v1401
        %v1403 = vrot.slane %v1402, 1
        %v1404 = vadd.f32 %v1402, %v1403
        %v1405 = vlaneseq
        %v1406 = vshrl.u32 %v1405, 7
        %v1407 = vsub.s32 7, %v1406
        %v1408 = vrot.slane %v1037, %v1407
        %v1409 = vmul.f32 %v1408, %v1029
        %v1410 = vmul.f32 %v1408, %v1030
        %v1411 = vmul.f32 %v1409, 1.442695
        %v1412 = vpow.pop %v1411
        %v1413 = vmul.f32 %v1410, 1.442695
        %v1414 = vpow.pop %v1413
        %v1415 = vmul.f32 %v1412, %v1384
        %v1416 = vmul.f32 %v1414, %v1385
        %v1417 = vlaneseq
        %v1418 = vshrl.u32 %v1417, 7
        %v1419 = vsub.s32 7, %v1418
        %v1420 = vrot.slane %v1038, %v1419
        %1421 = vset.pattern.permute.xlu0 7
        %1422 = vperm.xlu0 %1421, %v1056
        %v1423 = vpop.permute.xlu0 %1422
        %1425 = vset.pattern.permute.xlu0 7
        %1426 = vperm.xlu0 %1425, %v1057
        %v1427 = vpop.permute.xlu0 %1426
        %v1429 = vmul.f32 %v1420, %v1423
        %v1430 = vmul.f32 %v1420, %v1427
        %v1431 = vadd.f32 %v1415, %v1429
        %v1432 = vadd.f32 %v1416, %v1430
        %1433 = vset.pattern.permute.xlu0 7
        %1434 = vperm.xlu0 %1433, %v1058
        %v1435 = vpop.permute.xlu0 %1434
        %1437 = vset.pattern.permute.xlu0 7
        %1438 = vperm.xlu0 %1437, %v1059
        %v1439 = vpop.permute.xlu0 %1438
        %v1441 = vmul.f32 %v1435, %v1431
        %v1442 = vmul.f32 %v1439, %v1432
        %v1443 = vsel %vm753, %v1441, 0.0
        %v1444 = vsel %vm753, %v1442, 0.0
        %v1445 = vadd.f32 %v1443, %v1444
        %v1446 = vrot.slane %v1445, 4
        %v1447 = vadd.f32 %v1445, %v1446
        %v1448 = vrot.slane %v1447, 2
        %v1449 = vadd.f32 %v1447, %v1448
        %v1450 = vrot.slane %v1449, 1
        %v1451 = vadd.f32 %v1449, %v1450
        %vm1452 = vcmask 1040384
        %v1453 = vsel %vm1452, %v1122, %v1169
        %vm1454 = vcmask 1041408
        %v1455 = vsel %vm1454, %v1453, %v1216
        %vm1456 = vcmask 1042432
        %v1457 = vsel %vm1456, %v1455, %v1263
        %vm1458 = vcmask 1043456
        %v1459 = vsel %vm1458, %v1457, %v1310
        %vm1460 = vcmask 1044480
        %v1461 = vsel %vm1460, %v1459, %v1357
        %vm1462 = vcmask 1045504
        %v1463 = vsel %vm1462, %v1461, %v1404
        %vm1464 = vcmask 1046528
        %v1465 = vsel %vm1464, %v1463, %v1451
        %1466 = vst.msk [vmem:[#allocation8] sm:$0xff] %vm753, %v1465
        %1467 = vst.msk [vmem:[#allocation2] sm:$0xff] %vm753, %v1431
        %1468 = vst.msk [vmem:[#allocation2 + $0x8] sm:$0xff] %vm753, %v1432
        %v1469 = vld [vmem:[#allocation8] sm:$0xff]
        %v1470 = vld [vmem:[#allocation17] sm:$0x1]
        %v1472 = vlaneseq
        %v1473 = vshrl.u32 %v1472, 7
        %v1474 = vsub.s32 0, %v1473
        %v1475 = vrot.slane %v1470, %v1474
        %v1477 = vmul.f32 %v803, %v1475
        %v1478 = vadd.f32 %v1469, %v1477
        %v1479 = vsub.f32 0.0, %v739
        %v1480 = vmul.f32 %v1479, 1.442695
        %v1481 = vpow.pop %v1480
        %v1482 = vadd.f32 %v1481, 1.0
        %v1483 = vrcp.pop %v1482
        %v1484 = vmul.f32 1.0, %v1483
        %v1485 = vmul.f32 %v739, %v1484
        %1487 = vrot.lane.b32.xlu0 %v1485, 64
        %v1488 = vpop.permute.xlu0 %1487
        %v1490 = vmul.f32 %v1478, %v1488
        %v1491 = vpack.c.bf16 %v1490, %v1490
        %v1492 = vld [vmem:[%s12] sm:$0xf]
        %v1493 = vld [vmem:[%s12 + $0x4] sm:$0xf]
        %v1494 = vld [vmem:[%s12 + $0x8] sm:$0xf]
        %v1495 = vld [vmem:[%s12 + $0xc] sm:$0xf]
        %v1496 = vld [vmem:[%s12 + $0x10] sm:$0xf]
        %v1497 = vld [vmem:[%s12 + $0x14] sm:$0xf]
        %v1498 = vld [vmem:[%s12 + $0x18] sm:$0xf]
        %v1499 = vld [vmem:[%s12 + $0x1c] sm:$0xf]
        %v1508 = vunpack.c.l.b16 %v1492
        %v1509 = vunpack.c.l.b16 %v1493
        %v1510 = vunpack.c.l.b16 %v1494
        %v1511 = vunpack.c.l.b16 %v1495
        %v1512 = vunpack.c.l.b16 %v1496
        %v1513 = vunpack.c.l.b16 %v1497
        %v1514 = vunpack.c.l.b16 %v1498
        %v1515 = vunpack.c.l.b16 %v1499
        %v1516 = vpack.c.b16 %v1509, %v1508
        %v1517 = vpack.c.b16 %v1511, %v1510
        %v1518 = vpack.c.b16 %v1513, %v1512
        %v1519 = vpack.c.b16 %v1515, %v1514
        %v1525 = vsel %vm753, %v1491, 0
        %1527 = vmatprep.subr.bf16.mxu0 0
        %1528 = vmatpush1.bf16.msra.mxu0 0
        %1529 = vmatprep.subr.bf16.mxu0 0
        %1530 = vmatpush1.bf16.msra.mxu0 0
        %1531 = vmatprep.subr.bf16.mxu0 0
        %1532 = vmatpush1.bf16.msra.mxu0 0
        %1533 = vmatprep.subr.bf16.mxu0 0
        %1534 = vmatpush1.bf16.msra.mxu0 0
        %1535 = vmatprep.subr.bf16.mxu0 0
        %1536 = vmatpush1.bf16.msra.mxu0 %v1519
        %1537 = vmatprep.subr.bf16.mxu0 0
        %1538 = vmatpush1.bf16.msra.mxu0 %v1518
        %1539 = vmatprep.subr.bf16.mxu0 0
        %1540 = vmatpush1.bf16.msra.mxu0 %v1517
        %1541 = vmatprep.subr.bf16.mxu0 0
        %1542 = vmatpush1.bf16.msra.mxu0 %v1516
        %1543 = vmatprep.subr.bf16.mxu0 0
        %1544 = vmatpush2.bf16.msra.mxu0 0
        %1545 = vmatprep.subr.bf16.mxu0 0
        %1546 = vmatpush2.bf16.msra.mxu0 0
        %1547 = vmatprep.subr.bf16.mxu0 0
        %1548 = vmatpush2.bf16.msra.mxu0 0
        %1549 = vmatprep.subr.bf16.mxu0 0
        %1550 = vmatpush2.bf16.msra.mxu0 0
        %1551 = vmatprep.subr.bf16.mxu0 0
        %1552 = vmatpush2.bf16.msra.mxu0 0
        %1553 = vmatprep.subr.bf16.mxu0 0
        %1554 = vmatpush2.bf16.msra.mxu0 0
        %1555 = vmatprep.subr.bf16.mxu0 0
        %1556 = vmatpush2.bf16.msra.mxu0 0
        %1557 = vmatprep.subr.bf16.mxu0 0
        %1558 = vmatpush2.bf16.msra.mxu0 0
        %1559 = vmatprep.mubr.bf16.mxu0 0
        %1560 = vmatmul.mubr.bf16.gmra.mxu0 %v1525
        %v1561 = vpop.f32.mrf.mxu0
        %v1562 = vadd.f32 0.0, %v1561
        %v1563 = vpop.f32.mrf.mxu0
        %v1564 = vpop.f32.mrf.mxu0
        %v1565 = vpop.f32.mrf.mxu0
        %1566 = vdwg.mxu0
        %1567 = vst.msk [vmem:[%s626] sm:$0xff] %vm652, %v1562
        %s1568 = sand.u32 %s388, 1
        %s1569 = scalar_lea.sflag [#allocation11], %s1568
        %s1570 = sand.u32 %s388, 1
        %s1571 = smul.addr %s1570, 8
        %s1572 = scalar_lea.vmem [#allocation18], %s1571
        %s1573 = sand.u32 %s416, 1
        %s1574 = scalar_lea.sflag [#allocation20], %s1573
        %s1575 = sand.u32 %s416, 1
        %s1576 = smul.addr %s1575, 8
        %s1577 = scalar_lea.vmem [#allocation19], %s1576
        // Predicated region
        $region105: #{tpu_custom_call.1} parent=79 // pred_check
          %p1578 = pneg %p398
        $region106: #{tpu_custom_call.1} parent=79 // pred_check_branch
          %1580 = sbr.rel (%p1578) target = $region108
        $region107: #{tpu_custom_call.1} parent=79 // pred_region
          %s1582 = ssub.s32 128, 128
          %1583 = vsyncadd %s1569, %s1582
          %s1584 = sadd.s32 %s42, %s41
          %s1585 = smul.addr %s1584, 128
          %s1586 = scalar_lea.hbm %s15, %s1585
          %s1588 = sshll.u32 %s1572, 4
          %s1589 = int_to_ptr.vmem [resolvable:$true] %s1588
          %1591 = dma.vmem_to_hbm [thread:$0]  %s1589, 128, %s1586, %s1569
        $region108: #{tpu_custom_call.1} parent=79 // pred_fallthru
          _
        // Predicated region
        $region109: #{tpu_custom_call.1} parent=79 // pred_check
          %p1592 = pneg %p426
        $region110: #{tpu_custom_call.1} parent=79 // pred_check_branch
          %1594 = sbr.rel (%p1592) target = $region112
        $region111: #{tpu_custom_call.1} parent=79 // pred_region
          %s1596 = ssub.s32 128, 128
          %1597 = vsyncadd %s1574, %s1596
          %s1598 = sadd.s32 %s42, %s41
          %s1599 = smul.addr %s1598, 128
          %s1600 = scalar_lea.hbm %s16, %s1599
          %s1602 = sshll.u32 %s1577, 4
          %s1603 = int_to_ptr.vmem [resolvable:$true] %s1602
          %1605 = dma.vmem_to_hbm [thread:$0]  %s1603, 128, %s1600, %s1574
        $region112: #{tpu_custom_call.1} parent=79 // pred_fallthru
          _
      $region80: #{tpu_custom_call.1} parent=5 // pred_fallthru
        _
      %p1606 = scmp.le.s32.totalorder 2, %s32
      // Predicated region
      $region113: #{tpu_custom_call.1} parent=5 // pred_check
        %p1607 = pneg %p1606
      $region114: #{tpu_custom_call.1} parent=5 // pred_check_branch
        %1609 = sbr.rel (%p1607) target = $region116
      $region115: #{tpu_custom_call.1} parent=5 // pred_region
        %s1610 = ssub.s32 %s32, 2
        // Predicated region
        $region117: #{tpu_custom_call.1} parent=115 // pred_check
          %p1611 = pneg %p404
        $region118: #{tpu_custom_call.1} parent=115 // pred_check_branch
          %1613 = sbr.rel (%p1611) target = $region120
        $region119: #{tpu_custom_call.1} parent=115 // pred_region
          %s1614 = sand.u32 %s389, 1
          %s1615 = scalar_lea.sflag [#allocation11], %s1614
          %s1616 = sand.u32 %s389, 1
          %s1617 = smul.addr %s1616, 8
          %s1618 = scalar_lea.vmem [#allocation18], %s1617
          %1619 = dma.done %s1615, 128
        $region120: #{tpu_custom_call.1} parent=115 // pred_fallthru
          _
        // Predicated region
        $region121: #{tpu_custom_call.1} parent=115 // pred_check
          %p1620 = pneg %p432
        $region122: #{tpu_custom_call.1} parent=115 // pred_check_branch
          %1622 = sbr.rel (%p1620) target = $region124
        $region123: #{tpu_custom_call.1} parent=115 // pred_region
          %s1623 = sand.u32 %s417, 1
          %s1624 = scalar_lea.sflag [#allocation20], %s1623
          %s1625 = sand.u32 %s417, 1
          %s1626 = smul.addr %s1625, 8
          %s1627 = scalar_lea.vmem [#allocation19], %s1626
          %1628 = dma.done %s1624, 128
        $region124: #{tpu_custom_call.1} parent=115 // pred_fallthru
          _
      $region116: #{tpu_custom_call.1} parent=5 // pred_fallthru
        _
    $region6: #{tpu_custom_call.1} parent=1 // loop_footer
      %s36 = sadd.s32 1, %s32
    $region7: #{tpu_custom_call.1} parent=1 // loop_footer_branch
      %31 = sbr.rel target = $region3
    $region8: #{tpu_custom_call.1} parent=1 // loop_exit
      _
    %1629 = vsyncpa [#allocation10], 1
    %s1630 = scalar_lea.sflag [#allocation10], 1
    %1631 = vsyncpa %s1630, 1
    %1632 = vsyncpa [#allocation13], 1
    %1633 = vsyncpa [#allocation16], 1
    %1634 = vsyncpa [#allocation11], 1
    %s1635 = scalar_lea.sflag [#allocation11], 1
    %1636 = vsyncpa %s1635, 1
    %1637 = vsyncpa [#allocation20], 1
    %s1638 = scalar_lea.sflag [#allocation20], 1
    %1639 = vsyncpa %s1638, 1

</llo_original>
